<compile_context>
chip_gen: v6e
topology: v6e:2x2x1
jax: 0.10.0
libtpu: 0.0.40
codegen_flags: <defaults>
</compile_context>

<pallas_src>
import functools
import math

import jax
import jax.numpy as jnp
from jax.experimental import pallas as pl
from jax.experimental.pallas import tpu as pltpu


def _mha_kernel(q_ref, k_ref, v_ref, mask_ref,
                wq_ref, bq_ref, wk_ref, bk_ref, wv_ref, bv_ref,
                wo_ref, bo_ref, gamma_ref, beta_ref,
                out_ref,
                kh_scratch, vh_scratch,
                *, num_heads, d_head, eps, compute_dtype, approx_recip):
    f32 = jnp.float32
    t = pl.program_id(1)

    q_in = q_ref[0]                               # (TQ, D) f32 -- also the residual

    def project(x, w_ref, b_ref):
        # Full-width (rows, D) @ (D, D) GEMM -- keeps the MXU output dim wide.
        return jnp.dot(x.astype(compute_dtype), w_ref[...].astype(compute_dtype),
                       preferred_element_type=f32) + b_ref[...]

    def to_heads(x):
        # Head-major relayout to (H, rows, d_head).  The stack concatenates on
        # the *leading* (untiled) axis only -- no lane-axis concat is emitted.
        return jnp.stack(
            [x[:, h * d_head:(h + 1) * d_head] for h in range(num_heads)],
            axis=0)

    # K/V projection + head relayout happen once per batch (first query tile)
    # and persist in VMEM scratch across the query-tile axis.
    @pl.when(t == 0)
    def _():
        kp = project(k_ref[0], wk_ref, bk_ref)                  # (L, D) f32
        vp = project(v_ref[0], wv_ref, bv_ref)                  # (L, D) f32
        kh_scratch[...] = to_heads(kp).astype(kh_scratch.dtype)  # (H, L, dh)
        vh_scratch[...] = to_heads(vp).astype(vh_scratch.dtype)  # (H, L, dh)

    # Per-tile query path; softmax scale folded into the projection output
    # (TQ*D multiplies instead of H*TQ*L on the score matrix).
    scale = f32(1.0 / math.sqrt(d_head))
    qp = project(q_in, wq_ref, bq_ref) * scale                  # (TQ, D) f32
    qh = to_heads(qp).astype(compute_dtype)                     # (H, TQ, dh)

    kh = kh_scratch[...]                                        # (H, L, dh)
    vh = vh_scratch[...]                                        # (H, L, dh)

    # Additive mask bias, computed ONCE per grid step (hoisted out of all
    # per-head work).  Mask may be int8 / bool / f32; nonzero == attend.
    mask_bias = jnp.where(mask_ref[0].astype(f32) == 0.0,
                          f32(-1e9), f32(0.0))                  # (TQ, L)

    # Scores for ALL heads as one batched matmul stream; the contraction is
    # over the last dims directly (no explicit kh.T materialisation).
    att = jnp.einsum('hqe,hke->hqk', qh, kh,
                     preferred_element_type=f32)                # (H, TQ, L) f32
    att = att + mask_bias[None, :, :]

    # Numerically-stable softmax; the row normalisation is deferred until
    # AFTER the PV matmul (L*dh multiplies instead of L*L divides).
    att = att - jnp.max(att, axis=-1, keepdims=True)
    p = jnp.exp(att)                                            # unnormalised probs
    row_sum = jnp.sum(p, axis=-1, keepdims=True)                # (H, TQ, 1)

    ctx = jnp.einsum('hqk,hke->hqe', p.astype(compute_dtype), vh,
                     preferred_element_type=f32)                # (H, TQ, dh)
    ctx = ctx * pl.reciprocal(row_sum, approx=approx_recip)

    # Output projection: heads folded back via a head-batched GEMM against wo
    # in (H, dh, D) layout plus a cheap leading-axis sum (no lane concat).
    proj = jnp.einsum('hqe,hed->hqd', ctx.astype(compute_dtype),
                      wo_ref[...].astype(compute_dtype),
                      preferred_element_type=f32)               # (H, TQ, D)
    proj = jnp.sum(proj, axis=0) + bo_ref[...]                  # (TQ, D)

    # Residual + LayerNorm (kept in f32).
    x = q_in + proj
    mean = jnp.mean(x, axis=-1, keepdims=True)
    var = jnp.mean((x - mean) ** 2, axis=-1, keepdims=True)
    y = (x - mean) * jax.lax.rsqrt(var + eps)
    out_ref[0] = (y * gamma_ref[...] + beta_ref[...]).astype(out_ref.dtype)


def _pick_q_tile(seq_len):
    # With K/V projections cached across query tiles, smaller tiles cost no
    # redundant GEMM work and bound the live (H, TQ, L) score intermediate
    # (important under the v7x 64 MiB VMEM budget).
    for t in (256, 128, 512):
        if seq_len % t == 0:
            return t
    return seq_len            # small / ragged L: a single tile covers it


def multi_head_attention(q, k, v, attn_mask, params, *, num_heads,
                         use_bf16_matmul=False):
    """q, k, v: (B, L, D) f32.  attn_mask: (B, L, L) any dtype, nonzero = keep
    (int8/bool recommended to cut mask HBM traffic 4x vs f32), or None.

    params = (wq, bq, wk, bk, wv, bv, wo, bo, gamma, beta); Linear weights are
    (D_in, D_out) (already transposed from torch), biases/gamma/beta are (1, D).
    """
    B, L, D = q.shape
    assert D % num_heads == 0
    d_head = D // num_heads
    wq, bq, wk, bk, wv, bv, wo, bo, gamma, beta = params

    if attn_mask is None:                       # torch module: no masking
        attn_mask = jnp.ones((B, L, L), jnp.int8)

    # wo is (D_in, D_out) = (H*dh, D); hand the kernel a head-major (H, dh, D)
    # view so the output projection is a head-batched GEMM (no concat needed).
    wo_h = wo.reshape(num_heads, d_head, D)

    compute_dtype = jnp.bfloat16 if use_bf16_matmul else jnp.float32
    kernel = functools.partial(
        _mha_kernel, num_heads=num_heads, d_head=d_head, eps=1e-5,
        compute_dtype=compute_dtype,
        # EUP approx reciprocal only in the bf16 path; exact divide in the f32
        # path so the 1e-4 tolerance vs. the reference holds.
        approx_recip=use_bf16_matmul)

    tq = _pick_q_tile(L)
    grid = (B, L // tq)

    q_spec = pl.BlockSpec((1, tq, D), lambda b, t: (b, t, 0))
    kv_spec = pl.BlockSpec((1, L, D), lambda b, t: (b, 0, 0))
    mask_spec = pl.BlockSpec((1, tq, L), lambda b, t: (b, t, 0))
    w_spec = pl.BlockSpec((D, D), lambda b, t: (0, 0))
    wo_spec = pl.BlockSpec((num_heads, d_head, D), lambda b, t: (0, 0, 0))
    vec_spec = pl.BlockSpec((1, D), lambda b, t: (0, 0))
    out_spec = pl.BlockSpec((1, tq, D), lambda b, t: (b, t, 0))

    # Advisory cost estimate so XLA schedules around the fused call sensibly.
    flops = 8 * B * L * D * D + 4 * B * L * L * D          # 4 GEMMs + QK^T + PV
    bytes_accessed = (4 * B * L * D * 4                    # q, k, v, out (f32)
                      + B * L * L * attn_mask.dtype.itemsize
                      + (4 * D * D + 6 * D) * 4)           # weights / biases / LN
    cost = pl.CostEstimate(flops=flops,
                           transcendentals=num_heads * B * L * L,
                           bytes_accessed=bytes_accessed)

    return pl.pallas_call(
        kernel,
        out_shape=jax.ShapeDtypeStruct((B, L, D), jnp.float32),
        grid_spec=pltpu.PrefetchScalarGridSpec(
            num_scalar_prefetch=0,
            grid=grid,
            in_specs=[q_spec, kv_spec, kv_spec, mask_spec,
                      w_spec, vec_spec, w_spec, vec_spec, w_spec, vec_spec,
                      wo_spec, vec_spec, vec_spec, vec_spec],
            out_specs=out_spec,
            scratch_shapes=[
                pltpu.VMEM((num_heads, L, d_head), compute_dtype),   # K heads
                pltpu.VMEM((num_heads, L, d_head), compute_dtype),   # V heads
            ]),
        compiler_params=pltpu.CompilerParams(
            # Batch is independent -> "parallel" (megacore sharding).  The
            # query-tile axis carries the cached K/V scratch -> "arbitrary".
            dimension_semantics=("parallel", "arbitrary"),
            vmem_limit_bytes=64 * 1024 * 1024),
        cost_estimate=cost,
    )(q, k, v, attn_mask, wq, bq, wk, bk, wv, bv, wo_h, bo, gamma, beta)


def _reference(q, k, v, attn_mask, params, *, num_heads):
    """Pure-JAX reference mirroring the PyTorch module."""
    wq, bq, wk, bk, wv, bv, wo, bo, gamma, beta = params
    B, L, D = q.shape
    dh = D // num_heads
    residual = q

    def split_heads(x):
        return x.reshape(B, L, num_heads, dh).transpose(0, 2, 1, 3)  # (B,H,L,dh)

    Q = split_heads(q @ wq + bq)
    K = split_heads(k @ wk + bk)
    V = split_heads(v @ wv + bv)

    att = jnp.einsum('bhqd,bhkd->bhqk', Q, K) / math.sqrt(dh)
    att = jnp.where(attn_mask[:, None, :, :] == 0, -1e9, att)
    att = jax.nn.softmax(att, axis=-1)
    x = jnp.einsum('bhqk,bhkd->bhqd', att, V)
    x = x.transpose(0, 2, 1, 3).reshape(B, L, D)
    x = residual + (x @ wo + bo)
    mean = jnp.mean(x, axis=-1, keepdims=True)
    var = jnp.mean((x - mean) ** 2, axis=-1, keepdims=True)
    return (x - mean) / jnp.sqrt(var + 1e-5) * gamma + beta


if __name__ == "__main__":
    B, L, D, H = 2, 8, 32, 4

    key = jax.random.PRNGKey(0)
    keys = jax.random.split(key, 12)

    q = jax.random.normal(keys[0], (B, L, D), jnp.float32)
    k = jax.random.normal(keys[1], (B, L, D), jnp.float32)
    v = jax.random.normal(keys[2], (B, L, D), jnp.float32)

    # Mask as int8 (nonzero = attend): 4x less HBM traffic than an f32 mask.
    attn_mask = jnp.tril(jnp.ones((L, L), jnp.int8))[None].repeat(B, axis=0)

    def lin(kw, kb):
        bound = 1.0 / math.sqrt(D)
        w = jax.random.uniform(kw, (D, D), jnp.float32, -bound, bound)
        b = jax.random.uniform(kb, (1, D), jnp.float32, -bound, bound)
        return w, b

    wq, bq = lin(keys[3], keys[4])
    wk, bk = lin(keys[5], keys[6])
    wv, bv = lin(keys[7], keys[8])
    wo, bo = lin(keys[9], keys[10])
    gamma = jnp.ones((1, D), jnp.float32)
    beta = jnp.zeros((1, D), jnp.float32)
    params = (wq, bq, wk, bk, wv, bv, wo, bo, gamma, beta)

    out = multi_head_attention(q, k, v, attn_mask, params, num_heads=H)
    out = jax.block_until_ready(out)

    ref = _reference(q, k, v, attn_mask, params, num_heads=H)
    assert out.shape == (B, L, D)
    assert jnp.allclose(out, ref, atol=1e-4, rtol=1e-4), "mismatch vs reference"
    print("KERNEL_OK")
</pallas_src>

<mosaic_0001>
module attributes {stable_mosaic.version = 11 : i64} {
  func.func @_mha_kernel(%arg0: i32, %arg1: i32, %arg2: memref<1x8x32xf32, #tpu.memory_space<vmem>>, %arg3: memref<1x8x32xf32, #tpu.memory_space<vmem>>, %arg4: memref<1x8x32xf32, #tpu.memory_space<vmem>>, %arg5: memref<1x8x8xi8, #tpu.memory_space<vmem>>, %arg6: memref<32x32xf32, #tpu.memory_space<vmem>>, %arg7: memref<1x32xf32, #tpu.memory_space<vmem>>, %arg8: memref<32x32xf32, #tpu.memory_space<vmem>>, %arg9: memref<1x32xf32, #tpu.memory_space<vmem>>, %arg10: memref<32x32xf32, #tpu.memory_space<vmem>>, %arg11: memref<1x32xf32, #tpu.memory_space<vmem>>, %arg12: memref<4x8x32xf32, #tpu.memory_space<vmem>>, %arg13: memref<1x32xf32, #tpu.memory_space<vmem>>, %arg14: memref<1x32xf32, #tpu.memory_space<vmem>>, %arg15: memref<1x32xf32, #tpu.memory_space<vmem>>, %arg16: memref<1x8x32xf32, #tpu.memory_space<vmem>>, %arg17: memref<4x8x8xf32, #tpu.memory_space<vmem>>, %arg18: memref<4x8x8xf32, #tpu.memory_space<vmem>>) attributes {dimension_semantics = [#tpu.dimension_semantics<parallel>, #tpu.dimension_semantics<arbitrary>], iteration_bounds = array<i64: 2, 1>, scalar_prefetch = 0 : i64, scratch_operands = 2 : i64, tpu.core_type = #tpu.core_type<tc>, window_params = [{transform_indices = @transform_0, window_bounds = array<i64: 1, 8, 32>}, {transform_indices = @transform_1, window_bounds = array<i64: 1, 8, 32>}, {transform_indices = @transform_2, window_bounds = array<i64: 1, 8, 32>}, {transform_indices = @transform_3, window_bounds = array<i64: 1, 8, 8>}, {pipeline_mode = #tpu.pipeline_mode<synchronous>, transform_indices = @transform_4, window_bounds = array<i64: 32, 32>}, {pipeline_mode = #tpu.pipeline_mode<synchronous>, transform_indices = @transform_5, window_bounds = array<i64: 1, 32>}, {pipeline_mode = #tpu.pipeline_mode<synchronous>, transform_indices = @transform_6, window_bounds = array<i64: 32, 32>}, {pipeline_mode = #tpu.pipeline_mode<synchronous>, transform_indices = @transform_7, window_bounds = array<i64: 1, 32>}, {pipeline_mode = #tpu.pipeline_mode<synchronous>, transform_indices = @transform_8, window_bounds = array<i64: 32, 32>}, {pipeline_mode = #tpu.pipeline_mode<synchronous>, transform_indices = @transform_9, window_bounds = array<i64: 1, 32>}, {pipeline_mode = #tpu.pipeline_mode<synchronous>, transform_indices = @transform_10, window_bounds = array<i64: 4, 8, 32>}, {pipeline_mode = #tpu.pipeline_mode<synchronous>, transform_indices = @transform_11, window_bounds = array<i64: 1, 32>}, {pipeline_mode = #tpu.pipeline_mode<synchronous>, transform_indices = @transform_12, window_bounds = array<i64: 1, 32>}, {pipeline_mode = #tpu.pipeline_mode<synchronous>, transform_indices = @transform_13, window_bounds = array<i64: 1, 32>}, {transform_indices = @transform_14, window_bounds = array<i64: 1, 8, 32>}]} {
    %c0 = arith.constant 0 : index
    %c0_0 = arith.constant 0 : index
    %c0_1 = arith.constant 0 : index
    %0 = vector.load %arg2[%c0, %c0_0, %c0_1] : memref<1x8x32xf32, #tpu.memory_space<vmem>>, vector<1x8x32xf32>
    %1 = vector.shape_cast %0 : vector<1x8x32xf32> to vector<8x32xf32>
    %c0_i32 = arith.constant 0 : i32
    %2 = arith.cmpi eq, %arg1, %c0_i32 : i32
    %3 = arith.extui %2 : i1 to i32
    %c0_i32_2 = arith.constant 0 : i32
    %4 = arith.cmpi ne, %3, %c0_i32_2 : i32
    scf.if %4 {
      %c0_43 = arith.constant 0 : index
      %c0_44 = arith.constant 0 : index
      %c0_45 = arith.constant 0 : index
      %80 = vector.load %arg3[%c0_43, %c0_44, %c0_45] : memref<1x8x32xf32, #tpu.memory_space<vmem>>, vector<1x8x32xf32>
      %81 = vector.shape_cast %80 : vector<1x8x32xf32> to vector<8x32xf32>
      %c0_46 = arith.constant 0 : index
      %c0_47 = arith.constant 0 : index
      %82 = vector.load %arg8[%c0_46, %c0_47] : memref<32x32xf32, #tpu.memory_space<vmem>>, vector<32x32xf32>
      %cst_48 = arith.constant dense<0.000000e+00> : vector<8x32xf32>
      %83 = tpu.matmul %81, %82, %cst_48 {dimension_numbers = #tpu.dot_dimension_numbers<[1], [0], [0], [1], [0, 0, 1, 1], [], []>} : vector<8x32xf32>, vector<32x32xf32>, vector<8x32xf32> -> vector<8x32xf32>
      %c0_49 = arith.constant 0 : index
      %c0_50 = arith.constant 0 : index
      %84 = vector.load %arg9[%c0_49, %c0_50] : memref<1x32xf32, #tpu.memory_space<vmem>>, vector<1x32xf32>
      %85 = vector.broadcast %84 : vector<1x32xf32> to vector<8x32xf32>
      %86 = arith.addf %83, %85 : vector<8x32xf32>
      %c0_51 = arith.constant 0 : index
      %c0_52 = arith.constant 0 : index
      %c0_53 = arith.constant 0 : index
      %87 = vector.load %arg4[%c0_51, %c0_52, %c0_53] : memref<1x8x32xf32, #tpu.memory_space<vmem>>, vector<1x8x32xf32>
      %88 = vector.shape_cast %87 : vector<1x8x32xf32> to vector<8x32xf32>
      %c0_54 = arith.constant 0 : index
      %c0_55 = arith.constant 0 : index
      %89 = vector.load %arg10[%c0_54, %c0_55] : memref<32x32xf32, #tpu.memory_space<vmem>>, vector<32x32xf32>
      %cst_56 = arith.constant dense<0.000000e+00> : vector<8x32xf32>
      %90 = tpu.matmul %88, %89, %cst_56 {dimension_numbers = #tpu.dot_dimension_numbers<[1], [0], [0], [1], [0, 0, 1, 1], [], []>} : vector<8x32xf32>, vector<32x32xf32>, vector<8x32xf32> -> vector<8x32xf32>
      %c0_57 = arith.constant 0 : index
      %c0_58 = arith.constant 0 : index
      %91 = vector.load %arg11[%c0_57, %c0_58] : memref<1x32xf32, #tpu.memory_space<vmem>>, vector<1x32xf32>
      %92 = vector.broadcast %91 : vector<1x32xf32> to vector<8x32xf32>
      %93 = arith.addf %90, %92 : vector<8x32xf32>
      %94 = vector.extract_strided_slice %86 {offsets = [0, 0], sizes = [8, 8], strides = [1, 1]} : vector<8x32xf32> to vector<8x8xf32>
      %95 = vector.extract_strided_slice %86 {offsets = [0, 8], sizes = [8, 8], strides = [1, 1]} : vector<8x32xf32> to vector<8x8xf32>
      %96 = vector.extract_strided_slice %86 {offsets = [0, 16], sizes = [8, 8], strides = [1, 1]} : vector<8x32xf32> to vector<8x8xf32>
      %97 = vector.extract_strided_slice %86 {offsets = [0, 24], sizes = [8, 8], strides = [1, 1]} : vector<8x32xf32> to vector<8x8xf32>
      %98 = vector.shape_cast %94 : vector<8x8xf32> to vector<1x8x8xf32>
      %99 = vector.shape_cast %95 : vector<8x8xf32> to vector<1x8x8xf32>
      %100 = vector.shape_cast %96 : vector<8x8xf32> to vector<1x8x8xf32>
      %101 = vector.shape_cast %97 : vector<8x8xf32> to vector<1x8x8xf32>
      %102 = tpu.concatenate %98, %99, %100, %101 in 0 : vector<1x8x8xf32>, vector<1x8x8xf32>, vector<1x8x8xf32>, vector<1x8x8xf32> -> vector<4x8x8xf32>
      %c0_59 = arith.constant 0 : index
      %c0_60 = arith.constant 0 : index
      %c0_61 = arith.constant 0 : index
      %103 = vector.load %arg17[%c0_59, %c0_60, %c0_61] : memref<4x8x8xf32, #tpu.memory_space<vmem>>, vector<4x8x8xf32>
      tpu.vector_store %arg17[%c0_59, %c0_60, %c0_61], %102 {strides = array<i32>} : memref<4x8x8xf32, #tpu.memory_space<vmem>>, vector<4x8x8xf32>,
      %104 = vector.extract_strided_slice %93 {offsets = [0, 0], sizes = [8, 8], strides = [1, 1]} : vector<8x32xf32> to vector<8x8xf32>
      %105 = vector.extract_strided_slice %93 {offsets = [0, 8], sizes = [8, 8], strides = [1, 1]} : vector<8x32xf32> to vector<8x8xf32>
      %106 = vector.extract_strided_slice %93 {offsets = [0, 16], sizes = [8, 8], strides = [1, 1]} : vector<8x32xf32> to vector<8x8xf32>
      %107 = vector.extract_strided_slice %93 {offsets = [0, 24], sizes = [8, 8], strides = [1, 1]} : vector<8x32xf32> to vector<8x8xf32>
      %108 = vector.shape_cast %104 : vector<8x8xf32> to vector<1x8x8xf32>
      %109 = vector.shape_cast %105 : vector<8x8xf32> to vector<1x8x8xf32>
      %110 = vector.shape_cast %106 : vector<8x8xf32> to vector<1x8x8xf32>
      %111 = vector.shape_cast %107 : vector<8x8xf32> to vector<1x8x8xf32>
      %112 = tpu.concatenate %108, %109, %110, %111 in 0 : vector<1x8x8xf32>, vector<1x8x8xf32>, vector<1x8x8xf32>, vector<1x8x8xf32> -> vector<4x8x8xf32>
      %c0_62 = arith.constant 0 : index
      %c0_63 = arith.constant 0 : index
      %c0_64 = arith.constant 0 : index
      %113 = vector.load %arg18[%c0_62, %c0_63, %c0_64] : memref<4x8x8xf32, #tpu.memory_space<vmem>>, vector<4x8x8xf32>
      tpu.vector_store %arg18[%c0_62, %c0_63, %c0_64], %112 {strides = array<i32>} : memref<4x8x8xf32, #tpu.memory_space<vmem>>, vector<4x8x8xf32>,
    } else {
    }
    %c0_3 = arith.constant 0 : index
    %c0_4 = arith.constant 0 : index
    %5 = vector.load %arg6[%c0_3, %c0_4] : memref<32x32xf32, #tpu.memory_space<vmem>>, vector<32x32xf32>
    %cst = arith.constant dense<0.000000e+00> : vector<8x32xf32>
    %6 = tpu.matmul %1, %5, %cst {dimension_numbers = #tpu.dot_dimension_numbers<[1], [0], [0], [1], [0, 0, 1, 1], [], []>} : vector<8x32xf32>, vector<32x32xf32>, vector<8x32xf32> -> vector<8x32xf32>
    %c0_5 = arith.constant 0 : index
    %c0_6 = arith.constant 0 : index
    %7 = vector.load %arg7[%c0_5, %c0_6] : memref<1x32xf32, #tpu.memory_space<vmem>>, vector<1x32xf32>
    %8 = vector.broadcast %7 : vector<1x32xf32> to vector<8x32xf32>
    %9 = arith.addf %6, %8 : vector<8x32xf32>
    %cst_7 = arith.constant 0.353553385 : f32
    %10 = vector.broadcast %cst_7 : f32 to vector<8x32xf32>
    %11 = arith.mulf %9, %10 : vector<8x32xf32>
    %12 = vector.extract_strided_slice %11 {offsets = [0, 0], sizes = [8, 8], strides = [1, 1]} : vector<8x32xf32> to vector<8x8xf32>
    %13 = vector.extract_strided_slice %11 {offsets = [0, 8], sizes = [8, 8], strides = [1, 1]} : vector<8x32xf32> to vector<8x8xf32>
    %14 = vector.extract_strided_slice %11 {offsets = [0, 16], sizes = [8, 8], strides = [1, 1]} : vector<8x32xf32> to vector<8x8xf32>
    %15 = vector.extract_strided_slice %11 {offsets = [0, 24], sizes = [8, 8], strides = [1, 1]} : vector<8x32xf32> to vector<8x8xf32>
    %16 = vector.shape_cast %12 : vector<8x8xf32> to vector<1x8x8xf32>
    %17 = vector.shape_cast %13 : vector<8x8xf32> to vector<1x8x8xf32>
    %18 = vector.shape_cast %14 : vector<8x8xf32> to vector<1x8x8xf32>
    %19 = vector.shape_cast %15 : vector<8x8xf32> to vector<1x8x8xf32>
    %20 = tpu.concatenate %16, %17, %18, %19 in 0 : vector<1x8x8xf32>, vector<1x8x8xf32>, vector<1x8x8xf32>, vector<1x8x8xf32> -> vector<4x8x8xf32>
    %c0_8 = arith.constant 0 : index
    %c0_9 = arith.constant 0 : index
    %c0_10 = arith.constant 0 : index
    %21 = vector.load %arg17[%c0_8, %c0_9, %c0_10] : memref<4x8x8xf32, #tpu.memory_space<vmem>>, vector<4x8x8xf32>
    %c0_11 = arith.constant 0 : index
    %c0_12 = arith.constant 0 : index
    %c0_13 = arith.constant 0 : index
    %22 = vector.load %arg18[%c0_11, %c0_12, %c0_13] : memref<4x8x8xf32, #tpu.memory_space<vmem>>, vector<4x8x8xf32>
    %c0_14 = arith.constant 0 : index
    %c0_15 = arith.constant 0 : index
    %c0_16 = arith.constant 0 : index
    %23 = vector.load %arg5[%c0_14, %c0_15, %c0_16] : memref<1x8x8xi8, #tpu.memory_space<vmem>>, vector<1x8x8xi8>
    %24 = vector.shape_cast %23 : vector<1x8x8xi8> to vector<8x8xi8>
    %25 = arith.sitofp %24 : vector<8x8xi8> to vector<8x8xf32>
    %cst_17 = arith.constant 0.000000e+00 : f32
    %26 = vector.broadcast %cst_17 : f32 to vector<8x8xf32>
    %27 = arith.cmpf oeq, %25, %26 : vector<8x8xf32>
    %cst_18 = arith.constant -1.000000e+09 : f32
    %cst_19 = arith.constant 0.000000e+00 : f32
    %28 = vector.broadcast %cst_18 : f32 to vector<8x8xf32>
    %29 = vector.broadcast %cst_19 : f32 to vector<8x8xf32>
    %30 = arith.select %27, %28, %29 : vector<8x8xi1>, vector<8x8xf32>
    "tpu.trace_start"() <{level = 10 : i32, message = "hqe,hke->hqk"}> : () -> ()
    %cst_20 = arith.constant dense<0.000000e+00> : vector<4x8x8xf32>
    %31 = tpu.matmul %20, %21, %cst_20 {dimension_numbers = #tpu.dot_dimension_numbers<[2], [2], [1], [1], [0, 0, 0, 1, 1, 1], [0], [0]>} : vector<4x8x8xf32>, vector<4x8x8xf32>, vector<4x8x8xf32> -> vector<4x8x8xf32>
    "tpu.trace_stop"() : () -> ()
    %32 = vector.shape_cast %30 : vector<8x8xf32> to vector<1x8x8xf32>
    %33 = vector.broadcast %32 : vector<1x8x8xf32> to vector<4x8x8xf32>
    %34 = arith.addf %31, %33 : vector<4x8x8xf32>
    %cst_21 = arith.constant dense<0xFF800000> : vector<4x8xf32>
    %35 = vector.multi_reduction <maximumf>, %34, %cst_21 [2] : vector<4x8x8xf32> to vector<4x8xf32>
    %36 = vector.shape_cast %35 : vector<4x8xf32> to vector<4x8x1xf32>
    %37 = vector.broadcast %36 : vector<4x8x1xf32> to vector<4x8x8xf32>
    %38 = arith.subf %34, %37 : vector<4x8x8xf32>
    %39 = math.exp %38 : vector<4x8x8xf32>
    %cst_22 = arith.constant dense<0.000000e+00> : vector<4x8xf32>
    %40 = vector.multi_reduction <add>, %39, %cst_22 [2] : vector<4x8x8xf32> to vector<4x8xf32>
    %41 = vector.shape_cast %40 : vector<4x8xf32> to vector<4x8x1xf32>
    "tpu.trace_start"() <{level = 10 : i32, message = "hqk,hke->hqe"}> : () -> ()
    %cst_23 = arith.constant dense<0.000000e+00> : vector<4x8x8xf32>
    %42 = tpu.matmul %39, %22, %cst_23 {dimension_numbers = #tpu.dot_dimension_numbers<[2], [1], [1], [2], [0, 0, 0, 1, 1, 2], [0], [0]>} : vector<4x8x8xf32>, vector<4x8x8xf32>, vector<4x8x8xf32> -> vector<4x8x8xf32>
    "tpu.trace_stop"() : () -> ()
    %43 = tpu.reciprocal %41 : vector<4x8x1xf32> -> vector<4x8x1xf32>
    %44 = vector.broadcast %43 : vector<4x8x1xf32> to vector<4x8x8xf32>
    %45 = arith.mulf %42, %44 : vector<4x8x8xf32>
    %c0_24 = arith.constant 0 : index
    %c0_25 = arith.constant 0 : index
    %c0_26 = arith.constant 0 : index
    %46 = vector.load %arg12[%c0_24, %c0_25, %c0_26] : memref<4x8x32xf32, #tpu.memory_space<vmem>>, vector<4x8x32xf32>
    "tpu.trace_start"() <{level = 10 : i32, message = "hqe,hed->hqd"}> : () -> ()
    %cst_27 = arith.constant dense<0.000000e+00> : vector<4x8x32xf32>
    %47 = tpu.matmul %45, %46, %cst_27 {dimension_numbers = #tpu.dot_dimension_numbers<[2], [1], [1], [2], [0, 0, 0, 1, 1, 2], [0], [0]>} : vector<4x8x8xf32>, vector<4x8x32xf32>, vector<4x8x32xf32> -> vector<4x8x32xf32>
    "tpu.trace_stop"() : () -> ()
    %cst_28 = arith.constant dense<0.000000e+00> : vector<8x32xf32>
    %48 = vector.multi_reduction <add>, %47, %cst_28 [0] : vector<4x8x32xf32> to vector<8x32xf32>
    %c0_29 = arith.constant 0 : index
    %c0_30 = arith.constant 0 : index
    %49 = vector.load %arg13[%c0_29, %c0_30] : memref<1x32xf32, #tpu.memory_space<vmem>>, vector<1x32xf32>
    %50 = vector.broadcast %49 : vector<1x32xf32> to vector<8x32xf32>
    %51 = arith.addf %48, %50 : vector<8x32xf32>
    %52 = arith.addf %1, %51 : vector<8x32xf32>
    %cst_31 = arith.constant dense<0.000000e+00> : vector<8xf32>
    %53 = vector.multi_reduction <add>, %52, %cst_31 [1] : vector<8x32xf32> to vector<8xf32>
    %54 = vector.shape_cast %53 : vector<8xf32> to vector<8x1xf32>
    %cst_32 = arith.constant 3.200000e+01 : f32
    %55 = vector.broadcast %cst_32 : f32 to vector<8x1xf32>
    %56 = arith.divf %54, %55 : vector<8x1xf32>
    %57 = vector.broadcast %56 : vector<8x1xf32> to vector<8x32xf32>
    %58 = arith.subf %52, %57 : vector<8x32xf32>
    %59 = arith.mulf %58, %58 : vector<8x32xf32>
    %cst_33 = arith.constant dense<0.000000e+00> : vector<8xf32>
    %60 = vector.multi_reduction <add>, %59, %cst_33 [1] : vector<8x32xf32> to vector<8xf32>
    %61 = vector.shape_cast %60 : vector<8xf32> to vector<8x1xf32>
    %cst_34 = arith.constant 3.200000e+01 : f32
    %62 = vector.broadcast %cst_34 : f32 to vector<8x1xf32>
    %63 = arith.divf %61, %62 : vector<8x1xf32>
    %64 = vector.broadcast %56 : vector<8x1xf32> to vector<8x32xf32>
    %65 = arith.subf %52, %64 : vector<8x32xf32>
    %cst_35 = arith.constant 9.99999974E-6 : f32
    %66 = vector.broadcast %cst_35 : f32 to vector<8x1xf32>
    %67 = arith.addf %63, %66 : vector<8x1xf32>
    %68 = math.rsqrt %67 : vector<8x1xf32>
    %69 = vector.broadcast %68 : vector<8x1xf32> to vector<8x32xf32>
    %70 = arith.mulf %65, %69 : vector<8x32xf32>
    %c0_36 = arith.constant 0 : index
    %c0_37 = arith.constant 0 : index
    %71 = vector.load %arg14[%c0_36, %c0_37] : memref<1x32xf32, #tpu.memory_space<vmem>>, vector<1x32xf32>
    %72 = vector.broadcast %71 : vector<1x32xf32> to vector<8x32xf32>
    %73 = arith.mulf %70, %72 : vector<8x32xf32>
    %c0_38 = arith.constant 0 : index
    %c0_39 = arith.constant 0 : index
    %74 = vector.load %arg15[%c0_38, %c0_39] : memref<1x32xf32, #tpu.memory_space<vmem>>, vector<1x32xf32>
    %75 = vector.broadcast %74 : vector<1x32xf32> to vector<8x32xf32>
    %76 = arith.addf %73, %75 : vector<8x32xf32>
    %c0_40 = arith.constant 0 : index
    %c0_41 = arith.constant 0 : index
    %c0_42 = arith.constant 0 : index
    %77 = vector.load %arg16[%c0_40, %c0_41, %c0_42] : memref<1x8x32xf32, #tpu.memory_space<vmem>>, vector<1x8x32xf32>
    %78 = vector.shape_cast %77 : vector<1x8x32xf32> to vector<8x32xf32>
    %79 = vector.shape_cast %76 : vector<8x32xf32> to vector<1x8x32xf32>
    tpu.vector_store %arg16[%c0_40, %c0_41, %c0_42], %79 {strides = array<i32>} : memref<1x8x32xf32, #tpu.memory_space<vmem>>, vector<1x8x32xf32>,
    return
  }
  func.func @transform_0(%arg0: i32, %arg1: i32) -> (i32, i32, i32) {
    %c0_i32 = arith.constant 0 : i32
    %c0_i32_0 = arith.constant 0 : i32
    return %arg0, %arg1, %c0_i32 : i32, i32, i32
  }
  func.func @transform_1(%arg0: i32, %arg1: i32) -> (i32, i32, i32) {
    %c0_i32 = arith.constant 0 : i32
    %c0_i32_0 = arith.constant 0 : i32
    %c0_i32_1 = arith.constant 0 : i32
    return %arg0, %c0_i32, %c0_i32_0 : i32, i32, i32
  }
  func.func @transform_2(%arg0: i32, %arg1: i32) -> (i32, i32, i32) {
    %c0_i32 = arith.constant 0 : i32
    %c0_i32_0 = arith.constant 0 : i32
    %c0_i32_1 = arith.constant 0 : i32
    return %arg0, %c0_i32, %c0_i32_0 : i32, i32, i32
  }
  func.func @transform_3(%arg0: i32, %arg1: i32) -> (i32, i32, i32) {
    %c0_i32 = arith.constant 0 : i32
    %c0_i32_0 = arith.constant 0 : i32
    return %arg0, %arg1, %c0_i32 : i32, i32, i32
  }
  func.func @transform_4(%arg0: i32, %arg1: i32) -> (i32, i32) {
    %c0_i32 = arith.constant 0 : i32
    %c0_i32_0 = arith.constant 0 : i32
    %c0_i32_1 = arith.constant 0 : i32
    return %c0_i32, %c0_i32_0 : i32, i32
  }
  func.func @transform_5(%arg0: i32, %arg1: i32) -> (i32, i32) {
    %c0_i32 = arith.constant 0 : i32
    %c0_i32_0 = arith.constant 0 : i32
    %c0_i32_1 = arith.constant 0 : i32
    return %c0_i32, %c0_i32_0 : i32, i32
  }
  func.func @transform_6(%arg0: i32, %arg1: i32) -> (i32, i32) {
    %c0_i32 = arith.constant 0 : i32
    %c0_i32_0 = arith.constant 0 : i32
    %c0_i32_1 = arith.constant 0 : i32
    return %c0_i32, %c0_i32_0 : i32, i32
  }
  func.func @transform_7(%arg0: i32, %arg1: i32) -> (i32, i32) {
    %c0_i32 = arith.constant 0 : i32
    %c0_i32_0 = arith.constant 0 : i32
    %c0_i32_1 = arith.constant 0 : i32
    return %c0_i32, %c0_i32_0 : i32, i32
  }
  func.func @transform_8(%arg0: i32, %arg1: i32) -> (i32, i32) {
    %c0_i32 = arith.constant 0 : i32
    %c0_i32_0 = arith.constant 0 : i32
    %c0_i32_1 = arith.constant 0 : i32
    return %c0_i32, %c0_i32_0 : i32, i32
  }
  func.func @transform_9(%arg0: i32, %arg1: i32) -> (i32, i32) {
    %c0_i32 = arith.constant 0 : i32
    %c0_i32_0 = arith.constant 0 : i32
    %c0_i32_1 = arith.constant 0 : i32
    return %c0_i32, %c0_i32_0 : i32, i32
  }
  func.func @transform_10(%arg0: i32, %arg1: i32) -> (i32, i32, i32) {
    %c0_i32 = arith.constant 0 : i32
    %c0_i32_0 = arith.constant 0 : i32
    %c0_i32_1 = arith.constant 0 : i32
    %c0_i32_2 = arith.constant 0 : i32
    return %c0_i32, %c0_i32_0, %c0_i32_1 : i32, i32, i32
  }
  func.func @transform_11(%arg0: i32, %arg1: i32) -> (i32, i32) {
    %c0_i32 = arith.constant 0 : i32
    %c0_i32_0 = arith.constant 0 : i32
    %c0_i32_1 = arith.constant 0 : i32
    return %c0_i32, %c0_i32_0 : i32, i32
  }
  func.func @transform_12(%arg0: i32, %arg1: i32) -> (i32, i32) {
    %c0_i32 = arith.constant 0 : i32
    %c0_i32_0 = arith.constant 0 : i32
    %c0_i32_1 = arith.constant 0 : i32
    return %c0_i32, %c0_i32_0 : i32, i32
  }
  func.func @transform_13(%arg0: i32, %arg1: i32) -> (i32, i32) {
    %c0_i32 = arith.constant 0 : i32
    %c0_i32_0 = arith.constant 0 : i32
    %c0_i32_1 = arith.constant 0 : i32
    return %c0_i32, %c0_i32_0 : i32, i32
  }
  func.func @transform_14(%arg0: i32, %arg1: i32) -> (i32, i32, i32) {
    %c0_i32 = arith.constant 0 : i32
    %c0_i32_0 = arith.constant 0 : i32
    return %arg0, %arg1, %c0_i32 : i32, i32, i32
  }
}

</mosaic_0001>

<llo_original>
// kernel: tpu_custom_call.1
$region0: #{tpu_custom_call.1}
  #allocation0 [shape = 'u32[]', space=smem, size = 0x4, offset = 0x4, fixed_abs, tag = 'smem constant byte address 0x4 - core index']
  #allocation1 [shape = 'u32[144,128]{1,0:T(1,128)}', space=vmem, size = 0x12000, scoped, tag = 'internal scratch']
  #allocation2 [shape = 'f32[4,8,8]{2,1,0:T(8,128)}', space=vmem, size = 0x4000, scoped, tag = 'scratch operand']
  #allocation3 [shape = 'f32[4,8,8]{2,1,0:T(8,128)}', space=vmem, size = 0x4000, scoped, tag = 'scratch operand']
  %s0 = inlined_call_operand.hbm [shape: f32[2,8,32], index: 0, kind: input, shape index: {}]
  %s1 = inlined_call_operand.hbm [shape: f32[2,8,32], index: 1, kind: input, shape index: {}]
  %s2 = inlined_call_operand.hbm [shape: f32[2,8,32], index: 2, kind: input, shape index: {}]
  %s3 = inlined_call_operand.vmem [shape: s8[2,8,8], index: 3, kind: input, shape index: {}]
  %s4 = inlined_call_operand.hbm [shape: f32[32,32], index: 4, kind: input, shape index: {}]
  %s5 = inlined_call_operand.vmem [shape: f32[1,32], index: 5, kind: input, shape index: {}]
  %s6 = inlined_call_operand.hbm [shape: f32[32,32], index: 6, kind: input, shape index: {}]
  %s7 = inlined_call_operand.vmem [shape: f32[1,32], index: 7, kind: input, shape index: {}]
  %s8 = inlined_call_operand.hbm [shape: f32[32,32], index: 8, kind: input, shape index: {}]
  %s9 = inlined_call_operand.vmem [shape: f32[1,32], index: 9, kind: input, shape index: {}]
  %s10 = inlined_call_operand.hbm [shape: f32[4,8,32], index: 10, kind: input, shape index: {}]
  %s11 = inlined_call_operand.vmem [shape: f32[1,32], index: 11, kind: input, shape index: {}]
  %s12 = inlined_call_operand.vmem [shape: f32[1,32], index: 12, kind: input, shape index: {}]
  %s13 = inlined_call_operand.vmem [shape: f32[1,32], index: 13, kind: input, shape index: {}]
  %s14 = inlined_call_operand.hbm [shape: f32[2,8,32], index: 14, kind: output, shape index: {}]
  %s15 = sld [smem:[#allocation0]]
  $region121: #{tpu_custom_call.1} parent=0
    _
  %s17 = ssub.s32 1, %s15
  %s18 = scalar_select 0, %s17, %s15
  $region1: #{tpu_custom_call.1} parent=0
    #allocation4 [shape = 'u8[8192]{0}', space=vmem, size = 0x2000, scoped, tag = 'input window, operand 0']
    #allocation5 [shape = 's32[2]{0}', space=sflag, size = 0x8, scoped, tag = 'scoped memory for tpu_custom_call.1']
    #allocation6 [shape = 's32[2]{0}', space=sflag, size = 0x8, scoped, tag = 'scoped memory for tpu_custom_call.1']
    #allocation7 [shape = 'u8[8192]{0}', space=vmem, size = 0x2000, scoped, tag = 'input window, operand 1']
    #allocation8 [shape = 's32[2]{0}', space=sflag, size = 0x8, scoped, tag = 'scoped memory for tpu_custom_call.1']
    #allocation9 [shape = 'u8[8192]{0}', space=vmem, size = 0x2000, scoped, tag = 'input window, operand 2']
    #allocation10 [shape = 'u8[16384]{0}', space=vmem, size = 0x4000, scoped, tag = 'input window, operand 4, single buffered']
    #allocation11 [shape = 's32[1]{0}', space=sflag, size = 0x4, scoped, tag = 'scoped memory for tpu_custom_call.1']
    #allocation12 [shape = 'u8[16384]{0}', space=vmem, size = 0x4000, scoped, tag = 'input window, operand 6, single buffered']
    #allocation13 [shape = 'u8[16384]{0}', space=vmem, size = 0x4000, scoped, tag = 'input window, operand 8, single buffered']
    #allocation14 [shape = 's32[1]{0}', space=sflag, size = 0x4, scoped, tag = 'scoped memory for tpu_custom_call.1']
    #allocation15 [shape = 'u8[16384]{0}', space=vmem, size = 0x4000, scoped, tag = 'input window, operand 10, single buffered']
    #allocation16 [shape = 'u8[8192]{0}', space=vmem, size = 0x2000, scoped, tag = 'output window, operand 0']
    %19 = vsyncpa [#allocation5], 0
    %s20 = scalar_lea.sflag [#allocation5], 1
    %21 = vsyncpa %s20, 0
    %22 = vsyncpa [#allocation8], 0
    %s23 = scalar_lea.sflag [#allocation8], 1
    %24 = vsyncpa %s23, 0
    %25 = vsyncpa [#allocation11], 0
    %26 = vsyncpa [#allocation14], 0
    %27 = vsyncpa [#allocation6], 0
    %s28 = scalar_lea.sflag [#allocation6], 1
    %29 = vsyncpa %s28, 0
    loop: start=0, step=1, limit=4
    $region2: #{tpu_custom_call.1} parent=1 // loop_pre_header
      _
    $region3: #{tpu_custom_call.1} parent=1 // loop_header
      %s31 = sphi 0, %s35
      %p32 = scmp.ge.s32.totalorder %s31, 4
      %s38 = sphi 0, %s50
      %s39 = sphi 0, %s46
      %s40 = sphi 0, %s38
      %s41 = sphi 0, %s39
      %s42 = sphi 0, %s40
      %s43 = sphi 0, %s41
      %s55 = sphi 0, %s57
      %s58 = sphi 0, %s55
      %s59 = sphi 0, %s58
      %s75 = sphi 0, %s59
      %s81 = sphi 0, %s83
      %s84 = sphi 0, %s81
      %s85 = sphi 0, %s84
      %s101 = sphi 0, %s85
      %s107 = sphi 0, %s109
      %s110 = sphi 0, %s107
      %s111 = sphi 0, %s110
      %s127 = sphi 0, %s111
      %s135 = sphi 0, %s137
      %s138 = sphi 0, %s135
      %s139 = sphi 0, %s138
      %s155 = sphi 0, %s139
      %s159 = sphi 0, %s159
      %s161 = sphi 0, %s159
      %s162 = sphi 0, %s161
      %s176 = sphi 0, %s162
      %s180 = sphi 0, %s180
      %s182 = sphi 0, %s180
      %s183 = sphi 0, %s182
      %s197 = sphi 0, %s183
      %s201 = sphi 0, %s201
      %s203 = sphi 0, %s201
      %s204 = sphi 0, %s203
      %s218 = sphi 0, %s204
      %s222 = sphi 0, %s222
      %s224 = sphi 0, %s222
      %s225 = sphi 0, %s224
      %s239 = sphi 0, %s225
      %s243 = sphi 0, %s243
      %s245 = sphi 0, %s243
      %s246 = sphi 0, %s245
      %s260 = sphi 0, %s246
      %s264 = sphi 0, %s264
      %s266 = sphi 0, %s264
      %s267 = sphi 0, %s266
      %s281 = sphi 0, %s267
      %s285 = sphi 0, %s285
      %s287 = sphi 0, %s285
      %s288 = sphi 0, %s287
      %s302 = sphi 0, %s288
      %s306 = sphi 0, %s306
      %s308 = sphi 0, %s306
      %s309 = sphi 0, %s308
      %s323 = sphi 0, %s309
      %s327 = sphi 0, %s327
      %s329 = sphi 0, %s327
      %s330 = sphi 0, %s329
      %s344 = sphi 0, %s330
      %s348 = sphi 0, %s348
      %s350 = sphi 0, %s348
      %s351 = sphi 0, %s350
      %s365 = sphi 0, %s351
      %s373 = sphi 0, %s375
      %s376 = sphi 0, %s373
      %s377 = sphi 0, %s376
      %s393 = sphi 0, %s377
    $region4: #{tpu_custom_call.1} parent=1 // loop_header_branch
      %34 = sbr.rel (%p32) target = $region8
    $region5: #{tpu_custom_call.1} parent=1 // loop_body
      %s36 = ssub.s32 %s31, 1
      %s37 = ssub.s32 %s31, 2
      %s44 = sadd.s32 1, %s39
      %p45 = scmp.ge.s32.totalorder %s44, 1
      %s46 = scalar_select %p45, 0, %s44
      %s47 = sadd.s32 1, %s38
      %s48 = scalar_select %p45, %s47, %s38
      %p49 = scmp.ge.s32.totalorder %s48, 2
      %s50 = scalar_select %p49, 0, %s48
      %s51 = ssub.s32 %s38, %s50
      %s52 = ssub.s32 %s39, %s46
      %s53 = sor.u32 %s51, %s52
      %p54 = scmp.eq.s32.totalorder %s53, 0
      %s56 = sadd.s32 %s55, 1
      %s57 = scalar_select %p54, %s55, %s56
      %p60 = pneg %p54
      %p61 = scmp.eq.s32.totalorder %s31, 1
      %p62 = por %p60, %p61
      %p63 = scmp.ne.s32.totalorder %s55, %s58
      %p64 = scmp.eq.s32.totalorder %s31, 0
      %p65 = por %p63, %p64
      %p66 = scmp.ne.s32.totalorder %s55, %s58
      %p67 = scmp.eq.s32.totalorder %s36, 1
      %p68 = por %p66, %p67
      %p69 = scmp.ne.s32.totalorder %s58, %s59
      %p70 = scmp.eq.s32.totalorder %s36, 0
      %p71 = por %p69, %p70
      %p72 = scmp.ne.s32.totalorder %s58, %s59
      %p73 = scmp.eq.s32.totalorder %s37, 1
      %p74 = por %p72, %p73
      %p76 = scmp.ne.s32.totalorder %s59, %s75
      %p77 = scmp.eq.s32.totalorder %s37, 0
      %p78 = por %p76, %p77
      %s79 = ssub.s32 %s38, %s50
      %p80 = scmp.eq.s32.totalorder %s79, 0
      %s82 = sadd.s32 %s81, 1
      %s83 = scalar_select %p80, %s81, %s82
      %p86 = pneg %p80
      %p87 = scmp.eq.s32.totalorder %s31, 1
      %p88 = por %p86, %p87
      %p89 = scmp.ne.s32.totalorder %s81, %s84
      %p90 = scmp.eq.s32.totalorder %s31, 0
      %p91 = por %p89, %p90
      %p92 = scmp.ne.s32.totalorder %s81, %s84
      %p93 = scmp.eq.s32.totalorder %s36, 1
      %p94 = por %p92, %p93
      %p95 = scmp.ne.s32.totalorder %s84, %s85
      %p96 = scmp.eq.s32.totalorder %s36, 0
      %p97 = por %p95, %p96
      %p98 = scmp.ne.s32.totalorder %s84, %s85
      %p99 = scmp.eq.s32.totalorder %s37, 1
      %p100 = por %p98, %p99
      %p102 = scmp.ne.s32.totalorder %s85, %s101
      %p103 = scmp.eq.s32.totalorder %s37, 0
      %p104 = por %p102, %p103
      %s105 = ssub.s32 %s38, %s50
      %p106 = scmp.eq.s32.totalorder %s105, 0
      %s108 = sadd.s32 %s107, 1
      %s109 = scalar_select %p106, %s107, %s108
      %p112 = pneg %p106
      %p113 = scmp.eq.s32.totalorder %s31, 1
      %p114 = por %p112, %p113
      %p115 = scmp.ne.s32.totalorder %s107, %s110
      %p116 = scmp.eq.s32.totalorder %s31, 0
      %p117 = por %p115, %p116
      %p118 = scmp.ne.s32.totalorder %s107, %s110
      %p119 = scmp.eq.s32.totalorder %s36, 1
      %p120 = por %p118, %p119
      %p121 = scmp.ne.s32.totalorder %s110, %s111
      %p122 = scmp.eq.s32.totalorder %s36, 0
      %p123 = por %p121, %p122
      %p124 = scmp.ne.s32.totalorder %s110, %s111
      %p125 = scmp.eq.s32.totalorder %s37, 1
      %p126 = por %p124, %p125
      %p128 = scmp.ne.s32.totalorder %s111, %s127
      %p129 = scmp.eq.s32.totalorder %s37, 0
      %p130 = por %p128, %p129
      %s131 = ssub.s32 %s38, %s50
      %s132 = ssub.s32 %s39, %s46
      %s133 = sor.u32 %s131, %s132
      %p134 = scmp.eq.s32.totalorder %s133, 0
      %s136 = sadd.s32 %s135, 1
      %s137 = scalar_select %p134, %s135, %s136
      %p140 = pneg %p134
      %p141 = scmp.eq.s32.totalorder %s31, 1
      %p142 = por %p140, %p141
      %p143 = scmp.ne.s32.totalorder %s135, %s138
      %p144 = scmp.eq.s32.totalorder %s31, 0
      %p145 = por %p143, %p144
      %p146 = scmp.ne.s32.totalorder %s135, %s138
      %p147 = scmp.eq.s32.totalorder %s36, 1
      %p148 = por %p146, %p147
      %p149 = scmp.ne.s32.totalorder %s138, %s139
      %p150 = scmp.eq.s32.totalorder %s36, 0
      %p151 = por %p149, %p150
      %p152 = scmp.ne.s32.totalorder %s138, %s139
      %p153 = scmp.eq.s32.totalorder %s37, 1
      %p154 = por %p152, %p153
      %p156 = scmp.ne.s32.totalorder %s139, %s155
      %p157 = scmp.eq.s32.totalorder %s37, 0
      %p158 = por %p156, %p157
      %s160 = sadd.s32 %s159, 1
      %p163 = scmp.eq.s32.totalorder %s31, 1
      %p164 = scmp.ne.s32.totalorder %s159, %s161
      %p165 = scmp.eq.s32.totalorder %s31, 0
      %p166 = por %p164, %p165
      %p167 = scmp.ne.s32.totalorder %s159, %s161
      %p168 = scmp.eq.s32.totalorder %s36, 1
      %p169 = por %p167, %p168
      %p170 = scmp.ne.s32.totalorder %s161, %s162
      %p171 = scmp.eq.s32.totalorder %s36, 0
      %p172 = por %p170, %p171
      %p173 = scmp.ne.s32.totalorder %s161, %s162
      %p174 = scmp.eq.s32.totalorder %s37, 1
      %p175 = por %p173, %p174
      %p177 = scmp.ne.s32.totalorder %s162, %s176
      %p178 = scmp.eq.s32.totalorder %s37, 0
      %p179 = por %p177, %p178
      %s181 = sadd.s32 %s180, 1
      %p184 = scmp.eq.s32.totalorder %s31, 1
      %p185 = scmp.ne.s32.totalorder %s180, %s182
      %p186 = scmp.eq.s32.totalorder %s31, 0
      %p187 = por %p185, %p186
      %p188 = scmp.ne.s32.totalorder %s180, %s182
      %p189 = scmp.eq.s32.totalorder %s36, 1
      %p190 = por %p188, %p189
      %p191 = scmp.ne.s32.totalorder %s182, %s183
      %p192 = scmp.eq.s32.totalorder %s36, 0
      %p193 = por %p191, %p192
      %p194 = scmp.ne.s32.totalorder %s182, %s183
      %p195 = scmp.eq.s32.totalorder %s37, 1
      %p196 = por %p194, %p195
      %p198 = scmp.ne.s32.totalorder %s183, %s197
      %p199 = scmp.eq.s32.totalorder %s37, 0
      %p200 = por %p198, %p199
      %s202 = sadd.s32 %s201, 1
      %p205 = scmp.eq.s32.totalorder %s31, 1
      %p206 = scmp.ne.s32.totalorder %s201, %s203
      %p207 = scmp.eq.s32.totalorder %s31, 0
      %p208 = por %p206, %p207
      %p209 = scmp.ne.s32.totalorder %s201, %s203
      %p210 = scmp.eq.s32.totalorder %s36, 1
      %p211 = por %p209, %p210
      %p212 = scmp.ne.s32.totalorder %s203, %s204
      %p213 = scmp.eq.s32.totalorder %s36, 0
      %p214 = por %p212, %p213
      %p215 = scmp.ne.s32.totalorder %s203, %s204
      %p216 = scmp.eq.s32.totalorder %s37, 1
      %p217 = por %p215, %p216
      %p219 = scmp.ne.s32.totalorder %s204, %s218
      %p220 = scmp.eq.s32.totalorder %s37, 0
      %p221 = por %p219, %p220
      %s223 = sadd.s32 %s222, 1
      %p226 = scmp.eq.s32.totalorder %s31, 1
      %p227 = scmp.ne.s32.totalorder %s222, %s224
      %p228 = scmp.eq.s32.totalorder %s31, 0
      %p229 = por %p227, %p228
      %p230 = scmp.ne.s32.totalorder %s222, %s224
      %p231 = scmp.eq.s32.totalorder %s36, 1
      %p232 = por %p230, %p231
      %p233 = scmp.ne.s32.totalorder %s224, %s225
      %p234 = scmp.eq.s32.totalorder %s36, 0
      %p235 = por %p233, %p234
      %p236 = scmp.ne.s32.totalorder %s224, %s225
      %p237 = scmp.eq.s32.totalorder %s37, 1
      %p238 = por %p236, %p237
      %p240 = scmp.ne.s32.totalorder %s225, %s239
      %p241 = scmp.eq.s32.totalorder %s37, 0
      %p242 = por %p240, %p241
      %s244 = sadd.s32 %s243, 1
      %p247 = scmp.eq.s32.totalorder %s31, 1
      %p248 = scmp.ne.s32.totalorder %s243, %s245
      %p249 = scmp.eq.s32.totalorder %s31, 0
      %p250 = por %p248, %p249
      %p251 = scmp.ne.s32.totalorder %s243, %s245
      %p252 = scmp.eq.s32.totalorder %s36, 1
      %p253 = por %p251, %p252
      %p254 = scmp.ne.s32.totalorder %s245, %s246
      %p255 = scmp.eq.s32.totalorder %s36, 0
      %p256 = por %p254, %p255
      %p257 = scmp.ne.s32.totalorder %s245, %s246
      %p258 = scmp.eq.s32.totalorder %s37, 1
      %p259 = por %p257, %p258
      %p261 = scmp.ne.s32.totalorder %s246, %s260
      %p262 = scmp.eq.s32.totalorder %s37, 0
      %p263 = por %p261, %p262
      %s265 = sadd.s32 %s264, 1
      %p268 = scmp.eq.s32.totalorder %s31, 1
      %p269 = scmp.ne.s32.totalorder %s264, %s266
      %p270 = scmp.eq.s32.totalorder %s31, 0
      %p271 = por %p269, %p270
      %p272 = scmp.ne.s32.totalorder %s264, %s266
      %p273 = scmp.eq.s32.totalorder %s36, 1
      %p274 = por %p272, %p273
      %p275 = scmp.ne.s32.totalorder %s266, %s267
      %p276 = scmp.eq.s32.totalorder %s36, 0
      %p277 = por %p275, %p276
      %p278 = scmp.ne.s32.totalorder %s266, %s267
      %p279 = scmp.eq.s32.totalorder %s37, 1
      %p280 = por %p278, %p279
      %p282 = scmp.ne.s32.totalorder %s267, %s281
      %p283 = scmp.eq.s32.totalorder %s37, 0
      %p284 = por %p282, %p283
      %s286 = sadd.s32 %s285, 1
      %p289 = scmp.eq.s32.totalorder %s31, 1
      %p290 = scmp.ne.s32.totalorder %s285, %s287
      %p291 = scmp.eq.s32.totalorder %s31, 0
      %p292 = por %p290, %p291
      %p293 = scmp.ne.s32.totalorder %s285, %s287
      %p294 = scmp.eq.s32.totalorder %s36, 1
      %p295 = por %p293, %p294
      %p296 = scmp.ne.s32.totalorder %s287, %s288
      %p297 = scmp.eq.s32.totalorder %s36, 0
      %p298 = por %p296, %p297
      %p299 = scmp.ne.s32.totalorder %s287, %s288
      %p300 = scmp.eq.s32.totalorder %s37, 1
      %p301 = por %p299, %p300
      %p303 = scmp.ne.s32.totalorder %s288, %s302
      %p304 = scmp.eq.s32.totalorder %s37, 0
      %p305 = por %p303, %p304
      %s307 = sadd.s32 %s306, 1
      %p310 = scmp.eq.s32.totalorder %s31, 1
      %p311 = scmp.ne.s32.totalorder %s306, %s308
      %p312 = scmp.eq.s32.totalorder %s31, 0
      %p313 = por %p311, %p312
      %p314 = scmp.ne.s32.totalorder %s306, %s308
      %p315 = scmp.eq.s32.totalorder %s36, 1
      %p316 = por %p314, %p315
      %p317 = scmp.ne.s32.totalorder %s308, %s309
      %p318 = scmp.eq.s32.totalorder %s36, 0
      %p319 = por %p317, %p318
      %p320 = scmp.ne.s32.totalorder %s308, %s309
      %p321 = scmp.eq.s32.totalorder %s37, 1
      %p322 = por %p320, %p321
      %p324 = scmp.ne.s32.totalorder %s309, %s323
      %p325 = scmp.eq.s32.totalorder %s37, 0
      %p326 = por %p324, %p325
      %s328 = sadd.s32 %s327, 1
      %p331 = scmp.eq.s32.totalorder %s31, 1
      %p332 = scmp.ne.s32.totalorder %s327, %s329
      %p333 = scmp.eq.s32.totalorder %s31, 0
      %p334 = por %p332, %p333
      %p335 = scmp.ne.s32.totalorder %s327, %s329
      %p336 = scmp.eq.s32.totalorder %s36, 1
      %p337 = por %p335, %p336
      %p338 = scmp.ne.s32.totalorder %s329, %s330
      %p339 = scmp.eq.s32.totalorder %s36, 0
      %p340 = por %p338, %p339
      %p341 = scmp.ne.s32.totalorder %s329, %s330
      %p342 = scmp.eq.s32.totalorder %s37, 1
      %p343 = por %p341, %p342
      %p345 = scmp.ne.s32.totalorder %s330, %s344
      %p346 = scmp.eq.s32.totalorder %s37, 0
      %p347 = por %p345, %p346
      %s349 = sadd.s32 %s348, 1
      %p352 = scmp.eq.s32.totalorder %s31, 1
      %p353 = scmp.ne.s32.totalorder %s348, %s350
      %p354 = scmp.eq.s32.totalorder %s31, 0
      %p355 = por %p353, %p354
      %p356 = scmp.ne.s32.totalorder %s348, %s350
      %p357 = scmp.eq.s32.totalorder %s36, 1
      %p358 = por %p356, %p357
      %p359 = scmp.ne.s32.totalorder %s350, %s351
      %p360 = scmp.eq.s32.totalorder %s36, 0
      %p361 = por %p359, %p360
      %p362 = scmp.ne.s32.totalorder %s350, %s351
      %p363 = scmp.eq.s32.totalorder %s37, 1
      %p364 = por %p362, %p363
      %p366 = scmp.ne.s32.totalorder %s351, %s365
      %p367 = scmp.eq.s32.totalorder %s37, 0
      %p368 = por %p366, %p367
      %s369 = ssub.s32 %s38, %s50
      %s370 = ssub.s32 %s39, %s46
      %s371 = sor.u32 %s369, %s370
      %p372 = scmp.eq.s32.totalorder %s371, 0
      %s374 = sadd.s32 %s373, 1
      %s375 = scalar_select %p372, %s373, %s374
      %p378 = pneg %p372
      %p379 = scmp.eq.s32.totalorder %s31, 1
      %p380 = por %p378, %p379
      %p381 = scmp.ne.s32.totalorder %s373, %s376
      %p382 = scmp.eq.s32.totalorder %s31, 0
      %p383 = por %p381, %p382
      %p384 = scmp.ne.s32.totalorder %s373, %s376
      %p385 = scmp.eq.s32.totalorder %s36, 1
      %p386 = por %p384, %p385
      %p387 = scmp.ne.s32.totalorder %s376, %s377
      %p388 = scmp.eq.s32.totalorder %s36, 0
      %p389 = por %p387, %p388
      %p390 = scmp.ne.s32.totalorder %s376, %s377
      %p391 = scmp.eq.s32.totalorder %s37, 1
      %p392 = por %p390, %p391
      %p394 = scmp.ne.s32.totalorder %s377, %s393
      %p395 = scmp.eq.s32.totalorder %s37, 0
      %p396 = por %p394, %p395
      %p397 = scmp.le.s32.totalorder 1, %s31
      %p398 = scmp.lt.s32.totalorder %s31, 3
      %p399 = pnand %p397, %p398
      %p400 = pneg %p399
      // Predicated region
      $region9: #{tpu_custom_call.1} parent=5 // pred_check
        _
      $region10: #{tpu_custom_call.1} parent=5 // pred_check_branch
        %402 = sbr.rel (%p399) target = $region12
      $region11: #{tpu_custom_call.1} parent=5 // pred_region
        %s403 = ssub.s32 %s31, 1
        // Predicated region
        $region13: #{tpu_custom_call.1} parent=11 // pred_check
          %p404 = pneg %p172
        $region14: #{tpu_custom_call.1} parent=11 // pred_check_branch
          %406 = sbr.rel (%p404) target = $region16
        $region15: #{tpu_custom_call.1} parent=11 // pred_region
          %s408 = ssub.s32 512, 512
          %409 = vsyncadd [#allocation11], %s408
          %s410 = sshll.u32 [#allocation10], 4
          %s411 = int_to_ptr.vmem [resolvable:$true] %s410
          %416 = dma.hbm_to_vmem [thread:$0]  %s4, 512, %s411, [#allocation11], 128, 128, 8
        $region16: #{tpu_custom_call.1} parent=11 // pred_fallthru
          _
        // Predicated region
        $region17: #{tpu_custom_call.1} parent=11 // pred_check
          %p417 = pneg %p193
        $region18: #{tpu_custom_call.1} parent=11 // pred_check_branch
          %419 = sbr.rel (%p417) target = $region20
        $region19: #{tpu_custom_call.1} parent=11 // pred_region
          _
        $region20: #{tpu_custom_call.1} parent=11 // pred_fallthru
          _
        // Predicated region
        $region21: #{tpu_custom_call.1} parent=11 // pred_check
          %p420 = pneg %p214
        $region22: #{tpu_custom_call.1} parent=11 // pred_check_branch
          %422 = sbr.rel (%p420) target = $region24
        $region23: #{tpu_custom_call.1} parent=11 // pred_region
          %s424 = ssub.s32 512, 512
          %425 = vsyncadd [#allocation11], %s424
          %s426 = sshll.u32 [#allocation12], 4
          %s427 = int_to_ptr.vmem [resolvable:$true] %s426
          %432 = dma.hbm_to_vmem [thread:$0]  %s6, 512, %s427, [#allocation11], 128, 128, 8
        $region24: #{tpu_custom_call.1} parent=11 // pred_fallthru
          _
        // Predicated region
        $region25: #{tpu_custom_call.1} parent=11 // pred_check
          %p433 = pneg %p235
        $region26: #{tpu_custom_call.1} parent=11 // pred_check_branch
          %435 = sbr.rel (%p433) target = $region28
        $region27: #{tpu_custom_call.1} parent=11 // pred_region
          _
        $region28: #{tpu_custom_call.1} parent=11 // pred_fallthru
          _
        // Predicated region
        $region29: #{tpu_custom_call.1} parent=11 // pred_check
          %p436 = pneg %p256
        $region30: #{tpu_custom_call.1} parent=11 // pred_check_branch
          %438 = sbr.rel (%p436) target = $region32
        $region31: #{tpu_custom_call.1} parent=11 // pred_region
          %s440 = ssub.s32 512, 512
          %441 = vsyncadd [#allocation14], %s440
          %s442 = sshll.u32 [#allocation13], 4
          %s443 = int_to_ptr.vmem [resolvable:$true] %s442
          %448 = dma.hbm_to_vmem [thread:$0]  %s8, 512, %s443, [#allocation14], 128, 128, 8
        $region32: #{tpu_custom_call.1} parent=11 // pred_fallthru
          _
        // Predicated region
        $region33: #{tpu_custom_call.1} parent=11 // pred_check
          %p449 = pneg %p277
        $region34: #{tpu_custom_call.1} parent=11 // pred_check_branch
          %451 = sbr.rel (%p449) target = $region36
        $region35: #{tpu_custom_call.1} parent=11 // pred_region
          _
        $region36: #{tpu_custom_call.1} parent=11 // pred_fallthru
          _
        // Predicated region
        $region37: #{tpu_custom_call.1} parent=11 // pred_check
          %p452 = pneg %p298
        $region38: #{tpu_custom_call.1} parent=11 // pred_check_branch
          %454 = sbr.rel (%p452) target = $region40
        $region39: #{tpu_custom_call.1} parent=11 // pred_region
          %s456 = ssub.s32 512, 512
          %457 = vsyncadd [#allocation14], %s456
          %s458 = sshll.u32 [#allocation15], 4
          %s459 = int_to_ptr.vmem [resolvable:$true] %s458
          %464 = dma.hbm_to_vmem [thread:$0]  %s10, 512, %s459, [#allocation14], 128, 128, 8
        $region40: #{tpu_custom_call.1} parent=11 // pred_fallthru
          _
        // Predicated region
        $region41: #{tpu_custom_call.1} parent=11 // pred_check
          %p465 = pneg %p319
        $region42: #{tpu_custom_call.1} parent=11 // pred_check_branch
          %467 = sbr.rel (%p465) target = $region44
        $region43: #{tpu_custom_call.1} parent=11 // pred_region
          _
        $region44: #{tpu_custom_call.1} parent=11 // pred_fallthru
          _
        // Predicated region
        $region45: #{tpu_custom_call.1} parent=11 // pred_check
          %p468 = pneg %p340
        $region46: #{tpu_custom_call.1} parent=11 // pred_check_branch
          %470 = sbr.rel (%p468) target = $region48
        $region47: #{tpu_custom_call.1} parent=11 // pred_region
          _
        $region48: #{tpu_custom_call.1} parent=11 // pred_fallthru
          _
        // Predicated region
        $region49: #{tpu_custom_call.1} parent=11 // pred_check
          %p471 = pneg %p361
        $region50: #{tpu_custom_call.1} parent=11 // pred_check_branch
          %473 = sbr.rel (%p471) target = $region52
        $region51: #{tpu_custom_call.1} parent=11 // pred_region
          _
        $region52: #{tpu_custom_call.1} parent=11 // pred_fallthru
          _
      $region12: #{tpu_custom_call.1} parent=5 // pred_fallthru
        _
      %p474 = scmp.lt.s32.totalorder %s31, 2
      // Predicated region
      $region53: #{tpu_custom_call.1} parent=5 // pred_check
        %p475 = pneg %p474
      $region54: #{tpu_custom_call.1} parent=5 // pred_check_branch
        %477 = sbr.rel (%p475) target = $region56
      $region55: #{tpu_custom_call.1} parent=5 // pred_region
        // Predicated region
        $region57: #{tpu_custom_call.1} parent=55 // pred_check
          %p478 = pneg %p65
        $region58: #{tpu_custom_call.1} parent=55 // pred_check_branch
          %480 = sbr.rel (%p478) target = $region60
        $region59: #{tpu_custom_call.1} parent=55 // pred_region
          %s481 = sand.u32 %s55, 1
          %s482 = scalar_lea.sflag [#allocation5], %s481
          %s483 = sand.u32 %s55, 1
          %s484 = smul.addr %s483, 8
          %s485 = scalar_lea.vmem [#allocation4], %s484
          %s487 = ssub.s32 128, 128
          %488 = vsyncadd %s482, %s487
          %s489 = sadd.s32 %s39, %s38
          %s490 = smul.addr %s489, 128
          %s491 = scalar_lea.hbm %s0, %s490
          %s493 = sshll.u32 %s485, 4
          %s494 = int_to_ptr.vmem [resolvable:$true] %s493
          %496 = dma.hbm_to_vmem [thread:$0]  %s491, 128, %s494, %s482
        $region60: #{tpu_custom_call.1} parent=55 // pred_fallthru
          _
        // Predicated region
        $region61: #{tpu_custom_call.1} parent=55 // pred_check
          %p497 = pneg %p91
        $region62: #{tpu_custom_call.1} parent=55 // pred_check_branch
          %499 = sbr.rel (%p497) target = $region64
        $region63: #{tpu_custom_call.1} parent=55 // pred_region
          %s500 = sand.u32 %s31, 1
          %s501 = scalar_lea.sflag [#allocation8], %s500
          %s502 = sand.u32 %s81, 1
          %s503 = smul.addr %s502, 8
          %s504 = scalar_lea.vmem [#allocation7], %s503
          %s506 = ssub.s32 128, 128
          %507 = vsyncadd %s501, %s506
          %s508 = smul.addr %s38, 128
          %s509 = scalar_lea.hbm %s1, %s508
          %s511 = sshll.u32 %s504, 4
          %s512 = int_to_ptr.vmem [resolvable:$true] %s511
          %514 = dma.hbm_to_vmem [thread:$0]  %s509, 128, %s512, %s501
        $region64: #{tpu_custom_call.1} parent=55 // pred_fallthru
          _
        // Predicated region
        $region65: #{tpu_custom_call.1} parent=55 // pred_check
          %p515 = pneg %p117
        $region66: #{tpu_custom_call.1} parent=55 // pred_check_branch
          %517 = sbr.rel (%p515) target = $region68
        $region67: #{tpu_custom_call.1} parent=55 // pred_region
          %s518 = sand.u32 %s31, 1
          %s519 = scalar_lea.sflag [#allocation8], %s518
          %s520 = sand.u32 %s107, 1
          %s521 = smul.addr %s520, 8
          %s522 = scalar_lea.vmem [#allocation9], %s521
          %s524 = ssub.s32 128, 128
          %525 = vsyncadd %s519, %s524
          %s526 = smul.addr %s38, 128
          %s527 = scalar_lea.hbm %s2, %s526
          %s529 = sshll.u32 %s522, 4
          %s530 = int_to_ptr.vmem [resolvable:$true] %s529
          %532 = dma.hbm_to_vmem [thread:$0]  %s527, 128, %s530, %s519
        $region68: #{tpu_custom_call.1} parent=55 // pred_fallthru
          _
        // Predicated region
        $region69: #{tpu_custom_call.1} parent=55 // pred_check
          %p533 = pneg %p145
        $region70: #{tpu_custom_call.1} parent=55 // pred_check_branch
          %535 = sbr.rel (%p533) target = $region72
        $region71: #{tpu_custom_call.1} parent=55 // pred_region
          %p536 = scmp.lt.s32.totalorder %s38, 1
          %s537 = scalar_select %p536, %s38, 1
          %p538 = scmp.lt.s32.totalorder %s39, 0
          %s539 = scalar_select %p538, %s39, 0
          %s540 = sadd.s32 %s539, %s537
          %s541 = smul.addr %s540, 2
          %s542 = scalar_lea.vmem %s3, %s541
        $region72: #{tpu_custom_call.1} parent=55 // pred_fallthru
          _
      $region56: #{tpu_custom_call.1} parent=5 // pred_fallthru
        _
      %p543 = scmp.le.s32.totalorder 1, %s31
      %p544 = scmp.lt.s32.totalorder %s31, 3
      %p545 = pnand %p543, %p544
      %p546 = pneg %p545
      // Predicated region
      $region73: #{tpu_custom_call.1} parent=5 // pred_check
        _
      $region74: #{tpu_custom_call.1} parent=5 // pred_check_branch
        %548 = sbr.rel (%p545) target = $region76
      $region75: #{tpu_custom_call.1} parent=5 // pred_region
        %s549 = ssub.s32 %s31, 1
        %s550 = sand.u32 %s58, 1
        %s551 = scalar_lea.sflag [#allocation5], %s550
        %s552 = sand.u32 %s58, 1
        %s553 = smul.addr %s552, 8
        %s554 = scalar_lea.vmem [#allocation4], %s553
        // Predicated region
        $region77: #{tpu_custom_call.1} parent=75 // pred_check
          %p555 = pneg %p71
        $region78: #{tpu_custom_call.1} parent=75 // pred_check_branch
          %557 = sbr.rel (%p555) target = $region80
        $region79: #{tpu_custom_call.1} parent=75 // pred_region
          %558 = dma.done %s551, 128
        $region80: #{tpu_custom_call.1} parent=75 // pred_fallthru
          _
        %s559 = sand.u32 %s36, 1
        %s560 = scalar_lea.sflag [#allocation8], %s559
        %s561 = sand.u32 %s84, 1
        %s562 = smul.addr %s561, 8
        %s563 = scalar_lea.vmem [#allocation7], %s562
        // Predicated region
        $region81: #{tpu_custom_call.1} parent=75 // pred_check
          %p564 = pneg %p97
        $region82: #{tpu_custom_call.1} parent=75 // pred_check_branch
          %566 = sbr.rel (%p564) target = $region84
        $region83: #{tpu_custom_call.1} parent=75 // pred_region
          %567 = dma.done %s560, 128
        $region84: #{tpu_custom_call.1} parent=75 // pred_fallthru
          _
        %s568 = sand.u32 %s36, 1
        %s569 = scalar_lea.sflag [#allocation8], %s568
        %s570 = sand.u32 %s110, 1
        %s571 = smul.addr %s570, 8
        %s572 = scalar_lea.vmem [#allocation9], %s571
        // Predicated region
        $region85: #{tpu_custom_call.1} parent=75 // pred_check
          %p573 = pneg %p123
        $region86: #{tpu_custom_call.1} parent=75 // pred_check_branch
          %575 = sbr.rel (%p573) target = $region88
        $region87: #{tpu_custom_call.1} parent=75 // pred_region
          %576 = dma.done %s569, 128
        $region88: #{tpu_custom_call.1} parent=75 // pred_fallthru
          _
        // Predicated region
        $region89: #{tpu_custom_call.1} parent=75 // pred_check
          %p577 = pneg %p172
        $region90: #{tpu_custom_call.1} parent=75 // pred_check_branch
          %579 = sbr.rel (%p577) target = $region92
        $region91: #{tpu_custom_call.1} parent=75 // pred_region
          %580 = dma.done [#allocation11], 512
        $region92: #{tpu_custom_call.1} parent=75 // pred_fallthru
          _
        // Predicated region
        $region93: #{tpu_custom_call.1} parent=75 // pred_check
          %p581 = pneg %p214
        $region94: #{tpu_custom_call.1} parent=75 // pred_check_branch
          %583 = sbr.rel (%p581) target = $region96
        $region95: #{tpu_custom_call.1} parent=75 // pred_region
          %584 = dma.done [#allocation11], 512
        $region96: #{tpu_custom_call.1} parent=75 // pred_fallthru
          _
        // Predicated region
        $region97: #{tpu_custom_call.1} parent=75 // pred_check
          %p585 = pneg %p256
        $region98: #{tpu_custom_call.1} parent=75 // pred_check_branch
          %587 = sbr.rel (%p585) target = $region100
        $region99: #{tpu_custom_call.1} parent=75 // pred_region
          %588 = dma.done [#allocation14], 512
        $region100: #{tpu_custom_call.1} parent=75 // pred_fallthru
          _
        // Predicated region
        $region101: #{tpu_custom_call.1} parent=75 // pred_check
          %p589 = pneg %p298
        $region102: #{tpu_custom_call.1} parent=75 // pred_check_branch
          %591 = sbr.rel (%p589) target = $region104
        $region103: #{tpu_custom_call.1} parent=75 // pred_region
          %592 = dma.done [#allocation14], 512
        $region104: #{tpu_custom_call.1} parent=75 // pred_fallthru
          _
        %s593 = sand.u32 %s58, 1
        %s594 = scalar_lea.sflag [#allocation5], %s593
        %s595 = sand.u32 %s58, 1
        %s596 = smul.addr %s595, 8
        %s597 = scalar_lea.vmem [#allocation4], %s596
        %p598 = pneg %p71
        %p599 = pneg %p68
        %s600 = sand.u32 %s36, 1
        %s601 = scalar_lea.sflag [#allocation8], %s600
        %s602 = sand.u32 %s84, 1
        %s603 = smul.addr %s602, 8
        %s604 = scalar_lea.vmem [#allocation7], %s603
        %p605 = pneg %p97
        %p606 = pneg %p94
        %s607 = sand.u32 %s36, 1
        %s608 = scalar_lea.sflag [#allocation8], %s607
        %s609 = sand.u32 %s110, 1
        %s610 = smul.addr %s609, 8
        %s611 = scalar_lea.vmem [#allocation9], %s610
        %p612 = pneg %p123
        %p613 = pneg %p120
        %p614 = scmp.lt.s32.totalorder %s40, 1
        %s615 = scalar_select %p614, %s40, 1
        %p616 = scmp.lt.s32.totalorder %s41, 0
        %s617 = scalar_select %p616, %s41, 0
        %s618 = sadd.s32 %s617, %s615
        %s619 = smul.addr %s618, 2
        %s620 = scalar_lea.vmem %s3, %s619
        %p621 = pneg %p151
        %p622 = pneg %p148
        %p623 = pneg %p172
        %p624 = pneg %p169
        %p625 = pneg %p193
        %p626 = pneg %p190
        %p627 = pneg %p214
        %p628 = pneg %p211
        %p629 = pneg %p235
        %p630 = pneg %p232
        %p631 = pneg %p256
        %p632 = pneg %p253
        %p633 = pneg %p277
        %p634 = pneg %p274
        %p635 = pneg %p298
        %p636 = pneg %p295
        %p637 = pneg %p319
        %p638 = pneg %p316
        %p639 = pneg %p340
        %p640 = pneg %p337
        %p641 = pneg %p361
        %p642 = pneg %p358
        %p643 = pneg %p389
        %p644 = pneg %p386
        %s645 = sand.u32 %s376, 1
        %s646 = scalar_lea.sflag [#allocation6], %s645
        %s647 = sand.u32 %s376, 1
        %s648 = smul.addr %s647, 8
        %s649 = scalar_lea.vmem [#allocation16], %s648
        %p650 = scmp.lt.s32.totalorder %s40, 1
        %s651 = scalar_select %p650, %s40, 1
        %p652 = scmp.lt.s32.totalorder %s41, 0
        %s653 = scalar_select %p652, %s41, 0
        %s654 = sadd.s32 %s653, %s651
        %s655 = smul.addr %s654, 2
        %s656 = scalar_lea.vmem %s3, %s655
        %v657 = vld [vmem:[%s554] sm:$0xff]
        %p658 = scmp.eq.s32.totalorder %s41, 0
        // Predicated region
        $region105: #{tpu_custom_call.1} parent=75 // pred_check
          %p659 = pneg %p658
        $region106: #{tpu_custom_call.1} parent=75 // pred_check_branch
          %661 = sbr.rel (%p659) target = $region108
        $region107: #{tpu_custom_call.1} parent=75 // pred_region
          %v662 = vld [vmem:[%s563] sm:$0xff]
          %v663 = vld [vmem:[#allocation12] sm:$0xff]
          %v664 = vld [vmem:[#allocation12 + $0x8] sm:$0xff]
          %v665 = vld [vmem:[#allocation12 + $0x10] sm:$0xff]
          %v666 = vld [vmem:[#allocation12 + $0x18] sm:$0xff]
          %v667 = vld [vmem:[%s7] sm:$0x1]
          %v669 = vlaneseq
          %v670 = vshrl.u32 %v669, 7
          %v671 = vsub.s32 0, %v670
          %v672 = vrot.slane %v667, %v671
          %vm674 = vcmask 261120
          %v676 = vsel %vm674, %v662, 0
          %678 = vmatprep.subr.mxu0 0.0
          %679 = vmatpush1.msra.mxu0 0.0
          %680 = vmatprep.subr.mxu0 0.0
          %681 = vmatpush1.msra.mxu0 0.0
          %682 = vmatprep.subr.mxu0 0.0
          %683 = vmatpush1.msra.mxu0 0.0
          %684 = vmatprep.subr.mxu0 0.0
          %685 = vmatpush1.msra.mxu0 0.0
          %686 = vmatprep.subr.mxu0 0.0
          %687 = vmatpush1.msra.mxu0 0.0
          %688 = vmatprep.subr.mxu0 0.0
          %689 = vmatpush1.msra.mxu0 0.0
          %690 = vmatprep.subr.mxu0 0.0
          %691 = vmatpush1.msra.mxu0 0.0
          %692 = vmatprep.subr.mxu0 0.0
          %693 = vmatpush1.msra.mxu0 0.0
          %694 = vmatprep.subr.mxu0 0.0
          %695 = vmatpush1.msra.mxu0 0.0
          %696 = vmatprep.subr.mxu0 0.0
          %697 = vmatpush1.msra.mxu0 0.0
          %698 = vmatprep.subr.mxu0 0.0
          %699 = vmatpush1.msra.mxu0 0.0
          %700 = vmatprep.subr.mxu0 0.0
          %701 = vmatpush1.msra.mxu0 0.0
          %702 = vmatprep.subr.mxu0 0.0
          %703 = vmatpush1.msra.mxu0 %v666
          %704 = vmatprep.subr.mxu0 0.0
          %705 = vmatpush1.msra.mxu0 %v665
          %706 = vmatprep.subr.mxu0 0.0
          %707 = vmatpush1.msra.mxu0 %v664
          %708 = vmatprep.subr.mxu0 0.0
          %709 = vmatpush1.msra.mxu0 %v663
          %710 = vmatprep.subr.mxu0 0.0
          %711 = vmatpush2.msra.mxu0 0.0
          %712 = vmatprep.subr.mxu0 0.0
          %713 = vmatpush2.msra.mxu0 0.0
          %714 = vmatprep.subr.mxu0 0.0
          %715 = vmatpush2.msra.mxu0 0.0
          %716 = vmatprep.subr.mxu0 0.0
          %717 = vmatpush2.msra.mxu0 0.0
          %718 = vmatprep.subr.mxu0 0.0
          %719 = vmatpush2.msra.mxu0 0.0
          %720 = vmatprep.subr.mxu0 0.0
          %721 = vmatpush2.msra.mxu0 0.0
          %722 = vmatprep.subr.mxu0 0.0
          %723 = vmatpush2.msra.mxu0 0.0
          %724 = vmatprep.subr.mxu0 0.0
          %725 = vmatpush2.msra.mxu0 0.0
          %726 = vmatprep.subr.mxu0 0.0
          %727 = vmatpush2.msra.mxu0 0.0
          %728 = vmatprep.subr.mxu0 0.0
          %729 = vmatpush2.msra.mxu0 0.0
          %730 = vmatprep.subr.mxu0 0.0
          %731 = vmatpush2.msra.mxu0 0.0
          %732 = vmatprep.subr.mxu0 0.0
          %733 = vmatpush2.msra.mxu0 0.0
          %734 = vmatprep.subr.mxu0 0.0
          %735 = vmatpush2.msra.mxu0 0.0
          %736 = vmatprep.subr.mxu0 0.0
          %737 = vmatpush2.msra.mxu0 0.0
          %738 = vmatprep.subr.mxu0 0.0
          %739 = vmatpush2.msra.mxu0 0.0
          %740 = vmatprep.subr.mxu0 0.0
          %741 = vmatpush2.msra.mxu0 0.0
          %742 = vmatprep.mubr.f32.mxu0 0.0
          %743 = vmatmul.mubr.f32.gmra.mxu0 %v676
          %v744 = vpop.f32.mrf.mxu0
          %v745 = vadd.f32 %v672, %v744
          %v746 = vpop.f32.mrf.mxu0
          %747 = vdwg.mxu0
          %v748 = vld [vmem:[%s572] sm:$0xff]
          %v749 = vld [vmem:[#allocation13] sm:$0xff]
          %v750 = vld [vmem:[#allocation13 + $0x8] sm:$0xff]
          %v751 = vld [vmem:[#allocation13 + $0x10] sm:$0xff]
          %v752 = vld [vmem:[#allocation13 + $0x18] sm:$0xff]
          %v753 = vld [vmem:[%s9] sm:$0x1]
          %v755 = vlaneseq
          %v756 = vshrl.u32 %v755, 7
          %v757 = vsub.s32 0, %v756
          %v758 = vrot.slane %v753, %v757
          %v761 = vsel %vm674, %v748, 0
          %763 = vmatprep.subr.mxu0 0.0
          %764 = vmatpush1.msra.mxu0 0.0
          %765 = vmatprep.subr.mxu0 0.0
          %766 = vmatpush1.msra.mxu0 0.0
          %767 = vmatprep.subr.mxu0 0.0
          %768 = vmatpush1.msra.mxu0 0.0
          %769 = vmatprep.subr.mxu0 0.0
          %770 = vmatpush1.msra.mxu0 0.0
          %771 = vmatprep.subr.mxu0 0.0
          %772 = vmatpush1.msra.mxu0 0.0
          %773 = vmatprep.subr.mxu0 0.0
          %774 = vmatpush1.msra.mxu0 0.0
          %775 = vmatprep.subr.mxu0 0.0
          %776 = vmatpush1.msra.mxu0 0.0
          %777 = vmatprep.subr.mxu0 0.0
          %778 = vmatpush1.msra.mxu0 0.0
          %779 = vmatprep.subr.mxu0 0.0
          %780 = vmatpush1.msra.mxu0 0.0
          %781 = vmatprep.subr.mxu0 0.0
          %782 = vmatpush1.msra.mxu0 0.0
          %783 = vmatprep.subr.mxu0 0.0
          %784 = vmatpush1.msra.mxu0 0.0
          %785 = vmatprep.subr.mxu0 0.0
          %786 = vmatpush1.msra.mxu0 0.0
          %787 = vmatprep.subr.mxu0 0.0
          %788 = vmatpush1.msra.mxu0 %v752
          %789 = vmatprep.subr.mxu0 0.0
          %790 = vmatpush1.msra.mxu0 %v751
          %791 = vmatprep.subr.mxu0 0.0
          %792 = vmatpush1.msra.mxu0 %v750
          %793 = vmatprep.subr.mxu0 0.0
          %794 = vmatpush1.msra.mxu0 %v749
          %795 = vmatprep.subr.mxu0 0.0
          %796 = vmatpush2.msra.mxu0 0.0
          %797 = vmatprep.subr.mxu0 0.0
          %798 = vmatpush2.msra.mxu0 0.0
          %799 = vmatprep.subr.mxu0 0.0
          %800 = vmatpush2.msra.mxu0 0.0
          %801 = vmatprep.subr.mxu0 0.0
          %802 = vmatpush2.msra.mxu0 0.0
          %803 = vmatprep.subr.mxu0 0.0
          %804 = vmatpush2.msra.mxu0 0.0
          %805 = vmatprep.subr.mxu0 0.0
          %806 = vmatpush2.msra.mxu0 0.0
          %807 = vmatprep.subr.mxu0 0.0
          %808 = vmatpush2.msra.mxu0 0.0
          %809 = vmatprep.subr.mxu0 0.0
          %810 = vmatpush2.msra.mxu0 0.0
          %811 = vmatprep.subr.mxu0 0.0
          %812 = vmatpush2.msra.mxu0 0.0
          %813 = vmatprep.subr.mxu0 0.0
          %814 = vmatpush2.msra.mxu0 0.0
          %815 = vmatprep.subr.mxu0 0.0
          %816 = vmatpush2.msra.mxu0 0.0
          %817 = vmatprep.subr.mxu0 0.0
          %818 = vmatpush2.msra.mxu0 0.0
          %819 = vmatprep.subr.mxu0 0.0
          %820 = vmatpush2.msra.mxu0 0.0
          %821 = vmatprep.subr.mxu0 0.0
          %822 = vmatpush2.msra.mxu0 0.0
          %823 = vmatprep.subr.mxu0 0.0
          %824 = vmatpush2.msra.mxu0 0.0
          %825 = vmatprep.subr.mxu0 0.0
          %826 = vmatpush2.msra.mxu0 0.0
          %827 = vmatprep.mubr.f32.mxu0 0.0
          %828 = vmatmul.mubr.f32.gmra.mxu0 %v761
          %v829 = vpop.f32.mrf.mxu0
          %v830 = vadd.f32 %v758, %v829
          %v831 = vpop.f32.mrf.mxu0
          %832 = vdwg.mxu0
          %834 = vrot.lane.b32.xlu0 %v745, 120
          %v835 = vpop.permute.xlu0 %834
          %837 = vrot.lane.b32.xlu0 %v745, 112
          %v838 = vpop.permute.xlu0 %837
          %840 = vrot.lane.b32.xlu0 %v745, 104
          %v841 = vpop.permute.xlu0 %840
          %vm843 = vcmask 64512
          %844 = vst.msk [vmem:[#allocation2] sm:$0xff] %vm843, %v745
          %845 = vst.msk [vmem:[#allocation2 + $0x8] sm:$0xff] %vm843, %v835
          %846 = vst.msk [vmem:[#allocation2 + $0x10] sm:$0xff] %vm843, %v838
          %847 = vst.msk [vmem:[#allocation2 + $0x18] sm:$0xff] %vm843, %v841
          %849 = vrot.lane.b32.xlu0 %v830, 120
          %v850 = vpop.permute.xlu0 %849
          %852 = vrot.lane.b32.xlu0 %v830, 112
          %v853 = vpop.permute.xlu0 %852
          %855 = vrot.lane.b32.xlu0 %v830, 104
          %v856 = vpop.permute.xlu0 %855
          %858 = vst.msk [vmem:[#allocation3] sm:$0xff] %vm843, %v830
          %859 = vst.msk [vmem:[#allocation3 + $0x8] sm:$0xff] %vm843, %v850
          %860 = vst.msk [vmem:[#allocation3 + $0x10] sm:$0xff] %vm843, %v853
          %861 = vst.msk [vmem:[#allocation3 + $0x18] sm:$0xff] %vm843, %v856
        $region108: #{tpu_custom_call.1} parent=75 // pred_fallthru
          _
        %v862 = vld [vmem:[#allocation10] sm:$0xff]
        %v863 = vld [vmem:[#allocation10 + $0x8] sm:$0xff]
        %v864 = vld [vmem:[#allocation10 + $0x10] sm:$0xff]
        %v865 = vld [vmem:[#allocation10 + $0x18] sm:$0xff]
        %v866 = vld [vmem:[%s5] sm:$0x1]
        %v868 = vlaneseq
        %v869 = vshrl.u32 %v868, 7
        %v870 = vsub.s32 0, %v869
        %v871 = vrot.slane %v866, %v870
        %vm873 = vcmask 261120
        %v875 = vsel %vm873, %v657, 0
        %877 = vmatprep.subr.mxu0 0.0
        %878 = vmatpush1.msra.mxu0 0.0
        %879 = vmatprep.subr.mxu0 0.0
        %880 = vmatpush1.msra.mxu0 0.0
        %881 = vmatprep.subr.mxu0 0.0
        %882 = vmatpush1.msra.mxu0 0.0
        %883 = vmatprep.subr.mxu0 0.0
        %884 = vmatpush1.msra.mxu0 0.0
        %885 = vmatprep.subr.mxu0 0.0
        %886 = vmatpush1.msra.mxu0 0.0
        %887 = vmatprep.subr.mxu0 0.0
        %888 = vmatpush1.msra.mxu0 0.0
        %889 = vmatprep.subr.mxu0 0.0
        %890 = vmatpush1.msra.mxu0 0.0
        %891 = vmatprep.subr.mxu0 0.0
        %892 = vmatpush1.msra.mxu0 0.0
        %893 = vmatprep.subr.mxu0 0.0
        %894 = vmatpush1.msra.mxu0 0.0
        %895 = vmatprep.subr.mxu0 0.0
        %896 = vmatpush1.msra.mxu0 0.0
        %897 = vmatprep.subr.mxu0 0.0
        %898 = vmatpush1.msra.mxu0 0.0
        %899 = vmatprep.subr.mxu0 0.0
        %900 = vmatpush1.msra.mxu0 0.0
        %901 = vmatprep.subr.mxu0 0.0
        %902 = vmatpush1.msra.mxu0 %v865
        %903 = vmatprep.subr.mxu0 0.0
        %904 = vmatpush1.msra.mxu0 %v864
        %905 = vmatprep.subr.mxu0 0.0
        %906 = vmatpush1.msra.mxu0 %v863
        %907 = vmatprep.subr.mxu0 0.0
        %908 = vmatpush1.msra.mxu0 %v862
        %909 = vmatprep.subr.mxu0 0.0
        %910 = vmatpush2.msra.mxu0 0.0
        %911 = vmatprep.subr.mxu0 0.0
        %912 = vmatpush2.msra.mxu0 0.0
        %913 = vmatprep.subr.mxu0 0.0
        %914 = vmatpush2.msra.mxu0 0.0
        %915 = vmatprep.subr.mxu0 0.0
        %916 = vmatpush2.msra.mxu0 0.0
        %917 = vmatprep.subr.mxu0 0.0
        %918 = vmatpush2.msra.mxu0 0.0
        %919 = vmatprep.subr.mxu0 0.0
        %920 = vmatpush2.msra.mxu0 0.0
        %921 = vmatprep.subr.mxu0 0.0
        %922 = vmatpush2.msra.mxu0 0.0
        %923 = vmatprep.subr.mxu0 0.0
        %924 = vmatpush2.msra.mxu0 0.0
        %925 = vmatprep.subr.mxu0 0.0
        %926 = vmatpush2.msra.mxu0 0.0
        %927 = vmatprep.subr.mxu0 0.0
        %928 = vmatpush2.msra.mxu0 0.0
        %929 = vmatprep.subr.mxu0 0.0
        %930 = vmatpush2.msra.mxu0 0.0
        %931 = vmatprep.subr.mxu0 0.0
        %932 = vmatpush2.msra.mxu0 0.0
        %933 = vmatprep.subr.mxu0 0.0
        %934 = vmatpush2.msra.mxu0 0.0
        %935 = vmatprep.subr.mxu0 0.0
        %936 = vmatpush2.msra.mxu0 0.0
        %937 = vmatprep.subr.mxu0 0.0
        %938 = vmatpush2.msra.mxu0 0.0
        %939 = vmatprep.subr.mxu0 0.0
        %940 = vmatpush2.msra.mxu0 0.0
        %941 = vmatprep.mubr.f32.mxu0 0.0
        %942 = vmatmul.mubr.f32.gmra.mxu0 %v875
        %v943 = vpop.f32.mrf.mxu0
        %v944 = vadd.f32 %v871, %v943
        %v945 = vpop.f32.mrf.mxu0
        %946 = vdwg.mxu0
        %v947 = vmul.f32 %v944, 0.35355338
        %949 = vrot.lane.b32.xlu0 %v947, 120
        %v950 = vpop.permute.xlu0 %949
        %951 = vrot.lane.b32.xlu0 %v947, 112
        %v952 = vpop.permute.xlu0 %951
        %953 = vrot.lane.b32.xlu0 %v947, 104
        %v954 = vpop.permute.xlu0 %953
        %v955 = vld [vmem:[#allocation2] sm:$0xff]
        %v956 = vld [vmem:[#allocation2 + $0x8] sm:$0xff]
        %v957 = vld [vmem:[#allocation2 + $0x10] sm:$0xff]
        %v958 = vld [vmem:[#allocation2 + $0x18] sm:$0xff]
        %v959 = vld [vmem:[#allocation3] sm:$0xff]
        %v960 = vld [vmem:[#allocation3 + $0x8] sm:$0xff]
        %v961 = vld [vmem:[#allocation3 + $0x10] sm:$0xff]
        %v962 = vld [vmem:[#allocation3 + $0x18] sm:$0xff]
        %v963 = vld [vmem:[%s656] sm:$0x3]
        %v964 = vunpack.c.0.s8 %v963
        %v965 = vcvt.s32.f32 %v964
        %vm966 = vcmp.eq.f32.partialorder %v965, 0.0
        %v967 = vsel %vm966, -1e+09, 0.0
        %vm968 = vcmask 64512
        %v969 = vsel %vm968, %v947, 0
        %v972 = vsel %vm968, %v955, 0
        %974 = vmatprep.subr.mxu0 0.0
        %975 = vmatpush1.xpose.msra.mxu0 0.0
        %976 = vmatprep.subr.mxu0 0.0
        %977 = vmatpush1.xpose.msra.mxu0 0.0
        %978 = vmatprep.subr.mxu0 0.0
        %979 = vmatpush1.xpose.msra.mxu0 0.0
        %980 = vmatprep.subr.mxu0 0.0
        %981 = vmatpush1.xpose.msra.mxu0 0.0
        %982 = vmatprep.subr.mxu0 0.0
        %983 = vmatpush1.xpose.msra.mxu0 0.0
        %984 = vmatprep.subr.mxu0 0.0
        %985 = vmatpush1.xpose.msra.mxu0 0.0
        %986 = vmatprep.subr.mxu0 0.0
        %987 = vmatpush1.xpose.msra.mxu0 0.0
        %988 = vmatprep.subr.mxu0 0.0
        %989 = vmatpush1.xpose.msra.mxu0 0.0
        %990 = vmatprep.subr.mxu0 0.0
        %991 = vmatpush1.xpose.msra.mxu0 0.0
        %992 = vmatprep.subr.mxu0 0.0
        %993 = vmatpush1.xpose.msra.mxu0 0.0
        %994 = vmatprep.subr.mxu0 0.0
        %995 = vmatpush1.xpose.msra.mxu0 0.0
        %996 = vmatprep.subr.mxu0 0.0
        %997 = vmatpush1.xpose.msra.mxu0 0.0
        %998 = vmatprep.subr.mxu0 0.0
        %999 = vmatpush1.xpose.msra.mxu0 0.0
        %1000 = vmatprep.subr.mxu0 0.0
        %1001 = vmatpush1.xpose.msra.mxu0 0.0
        %1002 = vmatprep.subr.mxu0 0.0
        %1003 = vmatpush1.xpose.msra.mxu0 0.0
        %1004 = vmatprep.subr.mxu0 0.0
        %1005 = vmatpush1.xpose.msra.mxu0 %v972
        %1006 = vmatprep.subr.mxu0 0.0
        %1007 = vmatpush2.xpose.msra.mxu0 0.0
        %1008 = vmatprep.subr.mxu0 0.0
        %1009 = vmatpush2.xpose.msra.mxu0 0.0
        %1010 = vmatprep.subr.mxu0 0.0
        %1011 = vmatpush2.xpose.msra.mxu0 0.0
        %1012 = vmatprep.subr.mxu0 0.0
        %1013 = vmatpush2.xpose.msra.mxu0 0.0
        %1014 = vmatprep.subr.mxu0 0.0
        %1015 = vmatpush2.xpose.msra.mxu0 0.0
        %1016 = vmatprep.subr.mxu0 0.0
        %1017 = vmatpush2.xpose.msra.mxu0 0.0
        %1018 = vmatprep.subr.mxu0 0.0
        %1019 = vmatpush2.xpose.msra.mxu0 0.0
        %1020 = vmatprep.subr.mxu0 0.0
        %1021 = vmatpush2.xpose.msra.mxu0 0.0
        %1022 = vmatprep.subr.mxu0 0.0
        %1023 = vmatpush2.xpose.msra.mxu0 0.0
        %1024 = vmatprep.subr.mxu0 0.0
        %1025 = vmatpush2.xpose.msra.mxu0 0.0
        %1026 = vmatprep.subr.mxu0 0.0
        %1027 = vmatpush2.xpose.msra.mxu0 0.0
        %1028 = vmatprep.subr.mxu0 0.0
        %1029 = vmatpush2.xpose.msra.mxu0 0.0
        %1030 = vmatprep.subr.mxu0 0.0
        %1031 = vmatpush2.xpose.msra.mxu0 0.0
        %1032 = vmatprep.subr.mxu0 0.0
        %1033 = vmatpush2.xpose.msra.mxu0 0.0
        %1034 = vmatprep.subr.mxu0 0.0
        %1035 = vmatpush2.xpose.msra.mxu0 0.0
        %1036 = vmatprep.subr.mxu0 0.0
        %1037 = vmatpush2.xpose.msra.mxu0 0.0
        %1038 = vmatprep.mubr.f32.mxu0 0.0
        %1039 = vmatmul.mubr.f32.gmra.mxu0 %v969
        %v1040 = vpop.f32.mrf.mxu0
        %v1041 = vadd.f32 %v967, %v1040
        %v1042 = vpop.f32.mrf.mxu0
        %1043 = vdwg.mxu0
        %v1044 = vsel %vm968, %v950, 0
        %v1047 = vsel %vm968, %v956, 0
        %1049 = vmatprep.subr.mxu0 0.0
        %1050 = vmatpush1.xpose.msra.mxu0 0.0
        %1051 = vmatprep.subr.mxu0 0.0
        %1052 = vmatpush1.xpose.msra.mxu0 0.0
        %1053 = vmatprep.subr.mxu0 0.0
        %1054 = vmatpush1.xpose.msra.mxu0 0.0
        %1055 = vmatprep.subr.mxu0 0.0
        %1056 = vmatpush1.xpose.msra.mxu0 0.0
        %1057 = vmatprep.subr.mxu0 0.0
        %1058 = vmatpush1.xpose.msra.mxu0 0.0
        %1059 = vmatprep.subr.mxu0 0.0
        %1060 = vmatpush1.xpose.msra.mxu0 0.0
        %1061 = vmatprep.subr.mxu0 0.0
        %1062 = vmatpush1.xpose.msra.mxu0 0.0
        %1063 = vmatprep.subr.mxu0 0.0
        %1064 = vmatpush1.xpose.msra.mxu0 0.0
        %1065 = vmatprep.subr.mxu0 0.0
        %1066 = vmatpush1.xpose.msra.mxu0 0.0
        %1067 = vmatprep.subr.mxu0 0.0
        %1068 = vmatpush1.xpose.msra.mxu0 0.0
        %1069 = vmatprep.subr.mxu0 0.0
        %1070 = vmatpush1.xpose.msra.mxu0 0.0
        %1071 = vmatprep.subr.mxu0 0.0
        %1072 = vmatpush1.xpose.msra.mxu0 0.0
        %1073 = vmatprep.subr.mxu0 0.0
        %1074 = vmatpush1.xpose.msra.mxu0 0.0
        %1075 = vmatprep.subr.mxu0 0.0
        %1076 = vmatpush1.xpose.msra.mxu0 0.0
        %1077 = vmatprep.subr.mxu0 0.0
        %1078 = vmatpush1.xpose.msra.mxu0 0.0
        %1079 = vmatprep.subr.mxu0 0.0
        %1080 = vmatpush1.xpose.msra.mxu0 %v1047
        %1081 = vmatprep.subr.mxu0 0.0
        %1082 = vmatpush2.xpose.msra.mxu0 0.0
        %1083 = vmatprep.subr.mxu0 0.0
        %1084 = vmatpush2.xpose.msra.mxu0 0.0
        %1085 = vmatprep.subr.mxu0 0.0
        %1086 = vmatpush2.xpose.msra.mxu0 0.0
        %1087 = vmatprep.subr.mxu0 0.0
        %1088 = vmatpush2.xpose.msra.mxu0 0.0
        %1089 = vmatprep.subr.mxu0 0.0
        %1090 = vmatpush2.xpose.msra.mxu0 0.0
        %1091 = vmatprep.subr.mxu0 0.0
        %1092 = vmatpush2.xpose.msra.mxu0 0.0
        %1093 = vmatprep.subr.mxu0 0.0
        %1094 = vmatpush2.xpose.msra.mxu0 0.0
        %1095 = vmatprep.subr.mxu0 0.0
        %1096 = vmatpush2.xpose.msra.mxu0 0.0
        %1097 = vmatprep.subr.mxu0 0.0
        %1098 = vmatpush2.xpose.msra.mxu0 0.0
        %1099 = vmatprep.subr.mxu0 0.0
        %1100 = vmatpush2.xpose.msra.mxu0 0.0
        %1101 = vmatprep.subr.mxu0 0.0
        %1102 = vmatpush2.xpose.msra.mxu0 0.0
        %1103 = vmatprep.subr.mxu0 0.0
        %1104 = vmatpush2.xpose.msra.mxu0 0.0
        %1105 = vmatprep.subr.mxu0 0.0
        %1106 = vmatpush2.xpose.msra.mxu0 0.0
        %1107 = vmatprep.subr.mxu0 0.0
        %1108 = vmatpush2.xpose.msra.mxu0 0.0
        %1109 = vmatprep.subr.mxu0 0.0
        %1110 = vmatpush2.xpose.msra.mxu0 0.0
        %1111 = vmatprep.subr.mxu0 0.0
        %1112 = vmatpush2.xpose.msra.mxu0 0.0
        %1113 = vmatprep.mubr.f32.mxu0 0.0
        %1114 = vmatmul.mubr.f32.gmra.mxu0 %v1044
        %v1115 = vpop.f32.mrf.mxu0
        %v1116 = vadd.f32 %v967, %v1115
        %v1117 = vpop.f32.mrf.mxu0
        %1118 = vdwg.mxu0
        %v1119 = vsel %vm968, %v952, 0
        %v1122 = vsel %vm968, %v957, 0
        %1124 = vmatprep.subr.mxu0 0.0
        %1125 = vmatpush1.xpose.msra.mxu0 0.0
        %1126 = vmatprep.subr.mxu0 0.0
        %1127 = vmatpush1.xpose.msra.mxu0 0.0
        %1128 = vmatprep.subr.mxu0 0.0
        %1129 = vmatpush1.xpose.msra.mxu0 0.0
        %1130 = vmatprep.subr.mxu0 0.0
        %1131 = vmatpush1.xpose.msra.mxu0 0.0
        %1132 = vmatprep.subr.mxu0 0.0
        %1133 = vmatpush1.xpose.msra.mxu0 0.0
        %1134 = vmatprep.subr.mxu0 0.0
        %1135 = vmatpush1.xpose.msra.mxu0 0.0
        %1136 = vmatprep.subr.mxu0 0.0
        %1137 = vmatpush1.xpose.msra.mxu0 0.0
        %1138 = vmatprep.subr.mxu0 0.0
        %1139 = vmatpush1.xpose.msra.mxu0 0.0
        %1140 = vmatprep.subr.mxu0 0.0
        %1141 = vmatpush1.xpose.msra.mxu0 0.0
        %1142 = vmatprep.subr.mxu0 0.0
        %1143 = vmatpush1.xpose.msra.mxu0 0.0
        %1144 = vmatprep.subr.mxu0 0.0
        %1145 = vmatpush1.xpose.msra.mxu0 0.0
        %1146 = vmatprep.subr.mxu0 0.0
        %1147 = vmatpush1.xpose.msra.mxu0 0.0
        %1148 = vmatprep.subr.mxu0 0.0
        %1149 = vmatpush1.xpose.msra.mxu0 0.0
        %1150 = vmatprep.subr.mxu0 0.0
        %1151 = vmatpush1.xpose.msra.mxu0 0.0
        %1152 = vmatprep.subr.mxu0 0.0
        %1153 = vmatpush1.xpose.msra.mxu0 0.0
        %1154 = vmatprep.subr.mxu0 0.0
        %1155 = vmatpush1.xpose.msra.mxu0 %v1122
        %1156 = vmatprep.subr.mxu0 0.0
        %1157 = vmatpush2.xpose.msra.mxu0 0.0
        %1158 = vmatprep.subr.mxu0 0.0
        %1159 = vmatpush2.xpose.msra.mxu0 0.0
        %1160 = vmatprep.subr.mxu0 0.0
        %1161 = vmatpush2.xpose.msra.mxu0 0.0
        %1162 = vmatprep.subr.mxu0 0.0
        %1163 = vmatpush2.xpose.msra.mxu0 0.0
        %1164 = vmatprep.subr.mxu0 0.0
        %1165 = vmatpush2.xpose.msra.mxu0 0.0
        %1166 = vmatprep.subr.mxu0 0.0
        %1167 = vmatpush2.xpose.msra.mxu0 0.0
        %1168 = vmatprep.subr.mxu0 0.0
        %1169 = vmatpush2.xpose.msra.mxu0 0.0
        %1170 = vmatprep.subr.mxu0 0.0
        %1171 = vmatpush2.xpose.msra.mxu0 0.0
        %1172 = vmatprep.subr.mxu0 0.0
        %1173 = vmatpush2.xpose.msra.mxu0 0.0
        %1174 = vmatprep.subr.mxu0 0.0
        %1175 = vmatpush2.xpose.msra.mxu0 0.0
        %1176 = vmatprep.subr.mxu0 0.0
        %1177 = vmatpush2.xpose.msra.mxu0 0.0
        %1178 = vmatprep.subr.mxu0 0.0
        %1179 = vmatpush2.xpose.msra.mxu0 0.0
        %1180 = vmatprep.subr.mxu0 0.0
        %1181 = vmatpush2.xpose.msra.mxu0 0.0
        %1182 = vmatprep.subr.mxu0 0.0
        %1183 = vmatpush2.xpose.msra.mxu0 0.0
        %1184 = vmatprep.subr.mxu0 0.0
        %1185 = vmatpush2.xpose.msra.mxu0 0.0
        %1186 = vmatprep.subr.mxu0 0.0
        %1187 = vmatpush2.xpose.msra.mxu0 0.0
        %1188 = vmatprep.mubr.f32.mxu0 0.0
        %1189 = vmatmul.mubr.f32.gmra.mxu0 %v1119
        %v1190 = vpop.f32.mrf.mxu0
        %v1191 = vadd.f32 %v967, %v1190
        %v1192 = vpop.f32.mrf.mxu0
        %1193 = vdwg.mxu0
        %v1194 = vsel %vm968, %v954, 0
        %v1197 = vsel %vm968, %v958, 0
        %1199 = vmatprep.subr.mxu0 0.0
        %1200 = vmatpush1.xpose.msra.mxu0 0.0
        %1201 = vmatprep.subr.mxu0 0.0
        %1202 = vmatpush1.xpose.msra.mxu0 0.0
        %1203 = vmatprep.subr.mxu0 0.0
        %1204 = vmatpush1.xpose.msra.mxu0 0.0
        %1205 = vmatprep.subr.mxu0 0.0
        %1206 = vmatpush1.xpose.msra.mxu0 0.0
        %1207 = vmatprep.subr.mxu0 0.0
        %1208 = vmatpush1.xpose.msra.mxu0 0.0
        %1209 = vmatprep.subr.mxu0 0.0
        %1210 = vmatpush1.xpose.msra.mxu0 0.0
        %1211 = vmatprep.subr.mxu0 0.0
        %1212 = vmatpush1.xpose.msra.mxu0 0.0
        %1213 = vmatprep.subr.mxu0 0.0
        %1214 = vmatpush1.xpose.msra.mxu0 0.0
        %1215 = vmatprep.subr.mxu0 0.0
        %1216 = vmatpush1.xpose.msra.mxu0 0.0
        %1217 = vmatprep.subr.mxu0 0.0
        %1218 = vmatpush1.xpose.msra.mxu0 0.0
        %1219 = vmatprep.subr.mxu0 0.0
        %1220 = vmatpush1.xpose.msra.mxu0 0.0
        %1221 = vmatprep.subr.mxu0 0.0
        %1222 = vmatpush1.xpose.msra.mxu0 0.0
        %1223 = vmatprep.subr.mxu0 0.0
        %1224 = vmatpush1.xpose.msra.mxu0 0.0
        %1225 = vmatprep.subr.mxu0 0.0
        %1226 = vmatpush1.xpose.msra.mxu0 0.0
        %1227 = vmatprep.subr.mxu0 0.0
        %1228 = vmatpush1.xpose.msra.mxu0 0.0
        %1229 = vmatprep.subr.mxu0 0.0
        %1230 = vmatpush1.xpose.msra.mxu0 %v1197
        %1231 = vmatprep.subr.mxu0 0.0
        %1232 = vmatpush2.xpose.msra.mxu0 0.0
        %1233 = vmatprep.subr.mxu0 0.0
        %1234 = vmatpush2.xpose.msra.mxu0 0.0
        %1235 = vmatprep.subr.mxu0 0.0
        %1236 = vmatpush2.xpose.msra.mxu0 0.0
        %1237 = vmatprep.subr.mxu0 0.0
        %1238 = vmatpush2.xpose.msra.mxu0 0.0
        %1239 = vmatprep.subr.mxu0 0.0
        %1240 = vmatpush2.xpose.msra.mxu0 0.0
        %1241 = vmatprep.subr.mxu0 0.0
        %1242 = vmatpush2.xpose.msra.mxu0 0.0
        %1243 = vmatprep.subr.mxu0 0.0
        %1244 = vmatpush2.xpose.msra.mxu0 0.0
        %1245 = vmatprep.subr.mxu0 0.0
        %1246 = vmatpush2.xpose.msra.mxu0 0.0
        %1247 = vmatprep.subr.mxu0 0.0
        %1248 = vmatpush2.xpose.msra.mxu0 0.0
        %1249 = vmatprep.subr.mxu0 0.0
        %1250 = vmatpush2.xpose.msra.mxu0 0.0
        %1251 = vmatprep.subr.mxu0 0.0
        %1252 = vmatpush2.xpose.msra.mxu0 0.0
        %1253 = vmatprep.subr.mxu0 0.0
        %1254 = vmatpush2.xpose.msra.mxu0 0.0
        %1255 = vmatprep.subr.mxu0 0.0
        %1256 = vmatpush2.xpose.msra.mxu0 0.0
        %1257 = vmatprep.subr.mxu0 0.0
        %1258 = vmatpush2.xpose.msra.mxu0 0.0
        %1259 = vmatprep.subr.mxu0 0.0
        %1260 = vmatpush2.xpose.msra.mxu0 0.0
        %1261 = vmatprep.subr.mxu0 0.0
        %1262 = vmatpush2.xpose.msra.mxu0 0.0
        %1263 = vmatprep.mubr.f32.mxu0 0.0
        %1264 = vmatmul.mubr.f32.gmra.mxu0 %v1194
        %v1265 = vpop.f32.mrf.mxu0
        %v1266 = vadd.f32 %v967, %v1265
        %v1267 = vpop.f32.mrf.mxu0
        %1268 = vdwg.mxu0
        %v1269 = vsel %vm968, %v1041, -inf
        %1270 = vmax.xlane.f32.xlu0 %v1269
        %v1271 = vpop.xlane.xlu0 %1270
        %v1272 = vsel %vm968, %v1116, -inf
        %1273 = vmax.xlane.f32.xlu0 %v1272
        %v1274 = vpop.xlane.xlu0 %1273
        %v1275 = vsel %vm968, %v1191, -inf
        %1276 = vmax.xlane.f32.xlu0 %v1275
        %v1277 = vpop.xlane.xlu0 %1276
        %v1278 = vsel %vm968, %v1266, -inf
        %1279 = vmax.xlane.f32.xlu0 %v1278
        %v1280 = vpop.xlane.xlu0 %1279
        %v1281 = vsub.f32 %v1041, %v1271
        %v1282 = vsub.f32 %v1116, %v1274
        %v1283 = vsub.f32 %v1191, %v1277
        %v1284 = vsub.f32 %v1266, %v1280
        %v1285 = vmul.f32 %v1281, 1.442695
        %v1286 = vpow.pop %v1285
        %v1287 = vmul.f32 %v1282, 1.442695
        %v1288 = vpow.pop %v1287
        %v1289 = vmul.f32 %v1283, 1.442695
        %v1290 = vpow.pop %v1289
        %v1291 = vmul.f32 %v1284, 1.442695
        %v1292 = vpow.pop %v1291
        %v1293 = vsel %vm968, %v1286, 0.0
        %1294 = vadd.xlane.f32.xlu0 %v1293
        %v1295 = vpop.xlane.xlu0 %1294
        %v1296 = vsel %vm968, %v1288, 0.0
        %1297 = vadd.xlane.f32.xlu0 %v1296
        %v1298 = vpop.xlane.xlu0 %1297
        %v1299 = vsel %vm968, %v1290, 0.0
        %1300 = vadd.xlane.f32.xlu0 %v1299
        %v1301 = vpop.xlane.xlu0 %1300
        %v1302 = vsel %vm968, %v1292, 0.0
        %1303 = vadd.xlane.f32.xlu0 %v1302
        %v1304 = vpop.xlane.xlu0 %1303
        %v1306 = vsel %vm968, %v1286, 0
        %1308 = vmatprep.subr.mxu0 0.0
        %1309 = vmatpush1.msra.mxu0 0.0
        %1310 = vmatprep.subr.mxu0 0.0
        %1311 = vmatpush1.msra.mxu0 0.0
        %1312 = vmatprep.subr.mxu0 0.0
        %1313 = vmatpush1.msra.mxu0 0.0
        %1314 = vmatprep.subr.mxu0 0.0
        %1315 = vmatpush1.msra.mxu0 0.0
        %1316 = vmatprep.subr.mxu0 0.0
        %1317 = vmatpush1.msra.mxu0 0.0
        %1318 = vmatprep.subr.mxu0 0.0
        %1319 = vmatpush1.msra.mxu0 0.0
        %1320 = vmatprep.subr.mxu0 0.0
        %1321 = vmatpush1.msra.mxu0 0.0
        %1322 = vmatprep.subr.mxu0 0.0
        %1323 = vmatpush1.msra.mxu0 0.0
        %1324 = vmatprep.subr.mxu0 0.0
        %1325 = vmatpush1.msra.mxu0 0.0
        %1326 = vmatprep.subr.mxu0 0.0
        %1327 = vmatpush1.msra.mxu0 0.0
        %1328 = vmatprep.subr.mxu0 0.0
        %1329 = vmatpush1.msra.mxu0 0.0
        %1330 = vmatprep.subr.mxu0 0.0
        %1331 = vmatpush1.msra.mxu0 0.0
        %1332 = vmatprep.subr.mxu0 0.0
        %1333 = vmatpush1.msra.mxu0 0.0
        %1334 = vmatprep.subr.mxu0 0.0
        %1335 = vmatpush1.msra.mxu0 0.0
        %1336 = vmatprep.subr.mxu0 0.0
        %1337 = vmatpush1.msra.mxu0 0.0
        %1338 = vmatprep.subr.mxu0 0.0
        %1339 = vmatpush1.msra.mxu0 %v959
        %1340 = vmatprep.subr.mxu0 0.0
        %1341 = vmatpush2.msra.mxu0 0.0
        %1342 = vmatprep.subr.mxu0 0.0
        %1343 = vmatpush2.msra.mxu0 0.0
        %1344 = vmatprep.subr.mxu0 0.0
        %1345 = vmatpush2.msra.mxu0 0.0
        %1346 = vmatprep.subr.mxu0 0.0
        %1347 = vmatpush2.msra.mxu0 0.0
        %1348 = vmatprep.subr.mxu0 0.0
        %1349 = vmatpush2.msra.mxu0 0.0
        %1350 = vmatprep.subr.mxu0 0.0
        %1351 = vmatpush2.msra.mxu0 0.0
        %1352 = vmatprep.subr.mxu0 0.0
        %1353 = vmatpush2.msra.mxu0 0.0
        %1354 = vmatprep.subr.mxu0 0.0
        %1355 = vmatpush2.msra.mxu0 0.0
        %1356 = vmatprep.subr.mxu0 0.0
        %1357 = vmatpush2.msra.mxu0 0.0
        %1358 = vmatprep.subr.mxu0 0.0
        %1359 = vmatpush2.msra.mxu0 0.0
        %1360 = vmatprep.subr.mxu0 0.0
        %1361 = vmatpush2.msra.mxu0 0.0
        %1362 = vmatprep.subr.mxu0 0.0
        %1363 = vmatpush2.msra.mxu0 0.0
        %1364 = vmatprep.subr.mxu0 0.0
        %1365 = vmatpush2.msra.mxu0 0.0
        %1366 = vmatprep.subr.mxu0 0.0
        %1367 = vmatpush2.msra.mxu0 0.0
        %1368 = vmatprep.subr.mxu0 0.0
        %1369 = vmatpush2.msra.mxu0 0.0
        %1370 = vmatprep.subr.mxu0 0.0
        %1371 = vmatpush2.msra.mxu0 0.0
        %1372 = vmatprep.mubr.f32.mxu0 0.0
        %1373 = vmatmul.mubr.f32.gmra.mxu0 %v1306
        %v1374 = vpop.f32.mrf.mxu0
        %v1375 = vadd.f32 0.0, %v1374
        %v1376 = vpop.f32.mrf.mxu0
        %1377 = vdwg.mxu0
        %v1379 = vsel %vm968, %v1288, 0
        %1381 = vmatprep.subr.mxu0 0.0
        %1382 = vmatpush1.msra.mxu0 0.0
        %1383 = vmatprep.subr.mxu0 0.0
        %1384 = vmatpush1.msra.mxu0 0.0
        %1385 = vmatprep.subr.mxu0 0.0
        %1386 = vmatpush1.msra.mxu0 0.0
        %1387 = vmatprep.subr.mxu0 0.0
        %1388 = vmatpush1.msra.mxu0 0.0
        %1389 = vmatprep.subr.mxu0 0.0
        %1390 = vmatpush1.msra.mxu0 0.0
        %1391 = vmatprep.subr.mxu0 0.0
        %1392 = vmatpush1.msra.mxu0 0.0
        %1393 = vmatprep.subr.mxu0 0.0
        %1394 = vmatpush1.msra.mxu0 0.0
        %1395 = vmatprep.subr.mxu0 0.0
        %1396 = vmatpush1.msra.mxu0 0.0
        %1397 = vmatprep.subr.mxu0 0.0
        %1398 = vmatpush1.msra.mxu0 0.0
        %1399 = vmatprep.subr.mxu0 0.0
        %1400 = vmatpush1.msra.mxu0 0.0
        %1401 = vmatprep.subr.mxu0 0.0
        %1402 = vmatpush1.msra.mxu0 0.0
        %1403 = vmatprep.subr.mxu0 0.0
        %1404 = vmatpush1.msra.mxu0 0.0
        %1405 = vmatprep.subr.mxu0 0.0
        %1406 = vmatpush1.msra.mxu0 0.0
        %1407 = vmatprep.subr.mxu0 0.0
        %1408 = vmatpush1.msra.mxu0 0.0
        %1409 = vmatprep.subr.mxu0 0.0
        %1410 = vmatpush1.msra.mxu0 0.0
        %1411 = vmatprep.subr.mxu0 0.0
        %1412 = vmatpush1.msra.mxu0 %v960
        %1413 = vmatprep.subr.mxu0 0.0
        %1414 = vmatpush2.msra.mxu0 0.0
        %1415 = vmatprep.subr.mxu0 0.0
        %1416 = vmatpush2.msra.mxu0 0.0
        %1417 = vmatprep.subr.mxu0 0.0
        %1418 = vmatpush2.msra.mxu0 0.0
        %1419 = vmatprep.subr.mxu0 0.0
        %1420 = vmatpush2.msra.mxu0 0.0
        %1421 = vmatprep.subr.mxu0 0.0
        %1422 = vmatpush2.msra.mxu0 0.0
        %1423 = vmatprep.subr.mxu0 0.0
        %1424 = vmatpush2.msra.mxu0 0.0
        %1425 = vmatprep.subr.mxu0 0.0
        %1426 = vmatpush2.msra.mxu0 0.0
        %1427 = vmatprep.subr.mxu0 0.0
        %1428 = vmatpush2.msra.mxu0 0.0
        %1429 = vmatprep.subr.mxu0 0.0
        %1430 = vmatpush2.msra.mxu0 0.0
        %1431 = vmatprep.subr.mxu0 0.0
        %1432 = vmatpush2.msra.mxu0 0.0
        %1433 = vmatprep.subr.mxu0 0.0
        %1434 = vmatpush2.msra.mxu0 0.0
        %1435 = vmatprep.subr.mxu0 0.0
        %1436 = vmatpush2.msra.mxu0 0.0
        %1437 = vmatprep.subr.mxu0 0.0
        %1438 = vmatpush2.msra.mxu0 0.0
        %1439 = vmatprep.subr.mxu0 0.0
        %1440 = vmatpush2.msra.mxu0 0.0
        %1441 = vmatprep.subr.mxu0 0.0
        %1442 = vmatpush2.msra.mxu0 0.0
        %1443 = vmatprep.subr.mxu0 0.0
        %1444 = vmatpush2.msra.mxu0 0.0
        %1445 = vmatprep.mubr.f32.mxu0 0.0
        %1446 = vmatmul.mubr.f32.gmra.mxu0 %v1379
        %v1447 = vpop.f32.mrf.mxu0
        %v1448 = vadd.f32 0.0, %v1447
        %v1449 = vpop.f32.mrf.mxu0
        %1450 = vdwg.mxu0
        %v1452 = vsel %vm968, %v1290, 0
        %1454 = vmatprep.subr.mxu0 0.0
        %1455 = vmatpush1.msra.mxu0 0.0
        %1456 = vmatprep.subr.mxu0 0.0
        %1457 = vmatpush1.msra.mxu0 0.0
        %1458 = vmatprep.subr.mxu0 0.0
        %1459 = vmatpush1.msra.mxu0 0.0
        %1460 = vmatprep.subr.mxu0 0.0
        %1461 = vmatpush1.msra.mxu0 0.0
        %1462 = vmatprep.subr.mxu0 0.0
        %1463 = vmatpush1.msra.mxu0 0.0
        %1464 = vmatprep.subr.mxu0 0.0
        %1465 = vmatpush1.msra.mxu0 0.0
        %1466 = vmatprep.subr.mxu0 0.0
        %1467 = vmatpush1.msra.mxu0 0.0
        %1468 = vmatprep.subr.mxu0 0.0
        %1469 = vmatpush1.msra.mxu0 0.0
        %1470 = vmatprep.subr.mxu0 0.0
        %1471 = vmatpush1.msra.mxu0 0.0
        %1472 = vmatprep.subr.mxu0 0.0
        %1473 = vmatpush1.msra.mxu0 0.0
        %1474 = vmatprep.subr.mxu0 0.0
        %1475 = vmatpush1.msra.mxu0 0.0
        %1476 = vmatprep.subr.mxu0 0.0
        %1477 = vmatpush1.msra.mxu0 0.0
        %1478 = vmatprep.subr.mxu0 0.0
        %1479 = vmatpush1.msra.mxu0 0.0
        %1480 = vmatprep.subr.mxu0 0.0
        %1481 = vmatpush1.msra.mxu0 0.0
        %1482 = vmatprep.subr.mxu0 0.0
        %1483 = vmatpush1.msra.mxu0 0.0
        %1484 = vmatprep.subr.mxu0 0.0
        %1485 = vmatpush1.msra.mxu0 %v961
        %1486 = vmatprep.subr.mxu0 0.0
        %1487 = vmatpush2.msra.mxu0 0.0
        %1488 = vmatprep.subr.mxu0 0.0
        %1489 = vmatpush2.msra.mxu0 0.0
        %1490 = vmatprep.subr.mxu0 0.0
        %1491 = vmatpush2.msra.mxu0 0.0
        %1492 = vmatprep.subr.mxu0 0.0
        %1493 = vmatpush2.msra.mxu0 0.0
        %1494 = vmatprep.subr.mxu0 0.0
        %1495 = vmatpush2.msra.mxu0 0.0
        %1496 = vmatprep.subr.mxu0 0.0
        %1497 = vmatpush2.msra.mxu0 0.0
        %1498 = vmatprep.subr.mxu0 0.0
        %1499 = vmatpush2.msra.mxu0 0.0
        %1500 = vmatprep.subr.mxu0 0.0
        %1501 = vmatpush2.msra.mxu0 0.0
        %1502 = vmatprep.subr.mxu0 0.0
        %1503 = vmatpush2.msra.mxu0 0.0
        %1504 = vmatprep.subr.mxu0 0.0
        %1505 = vmatpush2.msra.mxu0 0.0
        %1506 = vmatprep.subr.mxu0 0.0
        %1507 = vmatpush2.msra.mxu0 0.0
        %1508 = vmatprep.subr.mxu0 0.0
        %1509 = vmatpush2.msra.mxu0 0.0
        %1510 = vmatprep.subr.mxu0 0.0
        %1511 = vmatpush2.msra.mxu0 0.0
        %1512 = vmatprep.subr.mxu0 0.0
        %1513 = vmatpush2.msra.mxu0 0.0
        %1514 = vmatprep.subr.mxu0 0.0
        %1515 = vmatpush2.msra.mxu0 0.0
        %1516 = vmatprep.subr.mxu0 0.0
        %1517 = vmatpush2.msra.mxu0 0.0
        %1518 = vmatprep.mubr.f32.mxu0 0.0
        %1519 = vmatmul.mubr.f32.gmra.mxu0 %v1452
        %v1520 = vpop.f32.mrf.mxu0
        %v1521 = vadd.f32 0.0, %v1520
        %v1522 = vpop.f32.mrf.mxu0
        %1523 = vdwg.mxu0
        %v1525 = vsel %vm968, %v1292, 0
        %1527 = vmatprep.subr.mxu0 0.0
        %1528 = vmatpush1.msra.mxu0 0.0
        %1529 = vmatprep.subr.mxu0 0.0
        %1530 = vmatpush1.msra.mxu0 0.0
        %1531 = vmatprep.subr.mxu0 0.0
        %1532 = vmatpush1.msra.mxu0 0.0
        %1533 = vmatprep.subr.mxu0 0.0
        %1534 = vmatpush1.msra.mxu0 0.0
        %1535 = vmatprep.subr.mxu0 0.0
        %1536 = vmatpush1.msra.mxu0 0.0
        %1537 = vmatprep.subr.mxu0 0.0
        %1538 = vmatpush1.msra.mxu0 0.0
        %1539 = vmatprep.subr.mxu0 0.0
        %1540 = vmatpush1.msra.mxu0 0.0
        %1541 = vmatprep.subr.mxu0 0.0
        %1542 = vmatpush1.msra.mxu0 0.0
        %1543 = vmatprep.subr.mxu0 0.0
        %1544 = vmatpush1.msra.mxu0 0.0
        %1545 = vmatprep.subr.mxu0 0.0
        %1546 = vmatpush1.msra.mxu0 0.0
        %1547 = vmatprep.subr.mxu0 0.0
        %1548 = vmatpush1.msra.mxu0 0.0
        %1549 = vmatprep.subr.mxu0 0.0
        %1550 = vmatpush1.msra.mxu0 0.0
        %1551 = vmatprep.subr.mxu0 0.0
        %1552 = vmatpush1.msra.mxu0 0.0
        %1553 = vmatprep.subr.mxu0 0.0
        %1554 = vmatpush1.msra.mxu0 0.0
        %1555 = vmatprep.subr.mxu0 0.0
        %1556 = vmatpush1.msra.mxu0 0.0
        %1557 = vmatprep.subr.mxu0 0.0
        %1558 = vmatpush1.msra.mxu0 %v962
        %1559 = vmatprep.subr.mxu0 0.0
        %1560 = vmatpush2.msra.mxu0 0.0
        %1561 = vmatprep.subr.mxu0 0.0
        %1562 = vmatpush2.msra.mxu0 0.0
        %1563 = vmatprep.subr.mxu0 0.0
        %1564 = vmatpush2.msra.mxu0 0.0
        %1565 = vmatprep.subr.mxu0 0.0
        %1566 = vmatpush2.msra.mxu0 0.0
        %1567 = vmatprep.subr.mxu0 0.0
        %1568 = vmatpush2.msra.mxu0 0.0
        %1569 = vmatprep.subr.mxu0 0.0
        %1570 = vmatpush2.msra.mxu0 0.0
        %1571 = vmatprep.subr.mxu0 0.0
        %1572 = vmatpush2.msra.mxu0 0.0
        %1573 = vmatprep.subr.mxu0 0.0
        %1574 = vmatpush2.msra.mxu0 0.0
        %1575 = vmatprep.subr.mxu0 0.0
        %1576 = vmatpush2.msra.mxu0 0.0
        %1577 = vmatprep.subr.mxu0 0.0
        %1578 = vmatpush2.msra.mxu0 0.0
        %1579 = vmatprep.subr.mxu0 0.0
        %1580 = vmatpush2.msra.mxu0 0.0
        %1581 = vmatprep.subr.mxu0 0.0
        %1582 = vmatpush2.msra.mxu0 0.0
        %1583 = vmatprep.subr.mxu0 0.0
        %1584 = vmatpush2.msra.mxu0 0.0
        %1585 = vmatprep.subr.mxu0 0.0
        %1586 = vmatpush2.msra.mxu0 0.0
        %1587 = vmatprep.subr.mxu0 0.0
        %1588 = vmatpush2.msra.mxu0 0.0
        %1589 = vmatprep.subr.mxu0 0.0
        %1590 = vmatpush2.msra.mxu0 0.0
        %1591 = vmatprep.mubr.f32.mxu0 0.0
        %1592 = vmatmul.mubr.f32.gmra.mxu0 %v1525
        %v1593 = vpop.f32.mrf.mxu0
        %v1594 = vadd.f32 0.0, %v1593
        %v1595 = vpop.f32.mrf.mxu0
        %1596 = vdwg.mxu0
        %v1597 = vrcp.pop %v1295
        %v1598 = vrcp.pop %v1298
        %v1599 = vrcp.pop %v1301
        %v1600 = vrcp.pop %v1304
        %v1601 = vmul.f32 %v1375, %v1597
        %v1602 = vmul.f32 %v1448, %v1598
        %v1603 = vmul.f32 %v1521, %v1599
        %v1604 = vmul.f32 %v1594, %v1600
        %v1605 = vld [vmem:[#allocation15] sm:$0xff]
        %v1606 = vld [vmem:[#allocation15 + $0x8] sm:$0xff]
        %v1607 = vld [vmem:[#allocation15 + $0x10] sm:$0xff]
        %v1608 = vld [vmem:[#allocation15 + $0x18] sm:$0xff]
        %v1610 = vsel %vm968, %v1601, 0
        %1612 = vmatprep.subr.mxu0 0.0
        %1613 = vmatpush1.msra.mxu0 0.0
        %1614 = vmatprep.subr.mxu0 0.0
        %1615 = vmatpush1.msra.mxu0 0.0
        %1616 = vmatprep.subr.mxu0 0.0
        %1617 = vmatpush1.msra.mxu0 0.0
        %1618 = vmatprep.subr.mxu0 0.0
        %1619 = vmatpush1.msra.mxu0 0.0
        %1620 = vmatprep.subr.mxu0 0.0
        %1621 = vmatpush1.msra.mxu0 0.0
        %1622 = vmatprep.subr.mxu0 0.0
        %1623 = vmatpush1.msra.mxu0 0.0
        %1624 = vmatprep.subr.mxu0 0.0
        %1625 = vmatpush1.msra.mxu0 0.0
        %1626 = vmatprep.subr.mxu0 0.0
        %1627 = vmatpush1.msra.mxu0 0.0
        %1628 = vmatprep.subr.mxu0 0.0
        %1629 = vmatpush1.msra.mxu0 0.0
        %1630 = vmatprep.subr.mxu0 0.0
        %1631 = vmatpush1.msra.mxu0 0.0
        %1632 = vmatprep.subr.mxu0 0.0
        %1633 = vmatpush1.msra.mxu0 0.0
        %1634 = vmatprep.subr.mxu0 0.0
        %1635 = vmatpush1.msra.mxu0 0.0
        %1636 = vmatprep.subr.mxu0 0.0
        %1637 = vmatpush1.msra.mxu0 0.0
        %1638 = vmatprep.subr.mxu0 0.0
        %1639 = vmatpush1.msra.mxu0 0.0
        %1640 = vmatprep.subr.mxu0 0.0
        %1641 = vmatpush1.msra.mxu0 0.0
        %1642 = vmatprep.subr.mxu0 0.0
        %1643 = vmatpush1.msra.mxu0 %v1605
        %1644 = vmatprep.subr.mxu0 0.0
        %1645 = vmatpush2.msra.mxu0 0.0
        %1646 = vmatprep.subr.mxu0 0.0
        %1647 = vmatpush2.msra.mxu0 0.0
        %1648 = vmatprep.subr.mxu0 0.0
        %1649 = vmatpush2.msra.mxu0 0.0
        %1650 = vmatprep.subr.mxu0 0.0
        %1651 = vmatpush2.msra.mxu0 0.0
        %1652 = vmatprep.subr.mxu0 0.0
        %1653 = vmatpush2.msra.mxu0 0.0
        %1654 = vmatprep.subr.mxu0 0.0
        %1655 = vmatpush2.msra.mxu0 0.0
        %1656 = vmatprep.subr.mxu0 0.0
        %1657 = vmatpush2.msra.mxu0 0.0
        %1658 = vmatprep.subr.mxu0 0.0
        %1659 = vmatpush2.msra.mxu0 0.0
        %1660 = vmatprep.subr.mxu0 0.0
        %1661 = vmatpush2.msra.mxu0 0.0
        %1662 = vmatprep.subr.mxu0 0.0
        %1663 = vmatpush2.msra.mxu0 0.0
        %1664 = vmatprep.subr.mxu0 0.0
        %1665 = vmatpush2.msra.mxu0 0.0
        %1666 = vmatprep.subr.mxu0 0.0
        %1667 = vmatpush2.msra.mxu0 0.0
        %1668 = vmatprep.subr.mxu0 0.0
        %1669 = vmatpush2.msra.mxu0 0.0
        %1670 = vmatprep.subr.mxu0 0.0
        %1671 = vmatpush2.msra.mxu0 0.0
        %1672 = vmatprep.subr.mxu0 0.0
        %1673 = vmatpush2.msra.mxu0 0.0
        %1674 = vmatprep.subr.mxu0 0.0
        %1675 = vmatpush2.msra.mxu0 0.0
        %1676 = vmatprep.mubr.f32.mxu0 0.0
        %1677 = vmatmul.mubr.f32.gmra.mxu0 %v1610
        %v1678 = vpop.f32.mrf.mxu0
        %v1679 = vadd.f32 0.0, %v1678
        %v1680 = vpop.f32.mrf.mxu0
        %1681 = vdwg.mxu0
        %v1683 = vsel %vm968, %v1602, 0
        %1685 = vmatprep.subr.mxu0 0.0
        %1686 = vmatpush1.msra.mxu0 0.0
        %1687 = vmatprep.subr.mxu0 0.0
        %1688 = vmatpush1.msra.mxu0 0.0
        %1689 = vmatprep.subr.mxu0 0.0
        %1690 = vmatpush1.msra.mxu0 0.0
        %1691 = vmatprep.subr.mxu0 0.0
        %1692 = vmatpush1.msra.mxu0 0.0
        %1693 = vmatprep.subr.mxu0 0.0
        %1694 = vmatpush1.msra.mxu0 0.0
        %1695 = vmatprep.subr.mxu0 0.0
        %1696 = vmatpush1.msra.mxu0 0.0
        %1697 = vmatprep.subr.mxu0 0.0
        %1698 = vmatpush1.msra.mxu0 0.0
        %1699 = vmatprep.subr.mxu0 0.0
        %1700 = vmatpush1.msra.mxu0 0.0
        %1701 = vmatprep.subr.mxu0 0.0
        %1702 = vmatpush1.msra.mxu0 0.0
        %1703 = vmatprep.subr.mxu0 0.0
        %1704 = vmatpush1.msra.mxu0 0.0
        %1705 = vmatprep.subr.mxu0 0.0
        %1706 = vmatpush1.msra.mxu0 0.0
        %1707 = vmatprep.subr.mxu0 0.0
        %1708 = vmatpush1.msra.mxu0 0.0
        %1709 = vmatprep.subr.mxu0 0.0
        %1710 = vmatpush1.msra.mxu0 0.0
        %1711 = vmatprep.subr.mxu0 0.0
        %1712 = vmatpush1.msra.mxu0 0.0
        %1713 = vmatprep.subr.mxu0 0.0
        %1714 = vmatpush1.msra.mxu0 0.0
        %1715 = vmatprep.subr.mxu0 0.0
        %1716 = vmatpush1.msra.mxu0 %v1606
        %1717 = vmatprep.subr.mxu0 0.0
        %1718 = vmatpush2.msra.mxu0 0.0
        %1719 = vmatprep.subr.mxu0 0.0
        %1720 = vmatpush2.msra.mxu0 0.0
        %1721 = vmatprep.subr.mxu0 0.0
        %1722 = vmatpush2.msra.mxu0 0.0
        %1723 = vmatprep.subr.mxu0 0.0
        %1724 = vmatpush2.msra.mxu0 0.0
        %1725 = vmatprep.subr.mxu0 0.0
        %1726 = vmatpush2.msra.mxu0 0.0
        %1727 = vmatprep.subr.mxu0 0.0
        %1728 = vmatpush2.msra.mxu0 0.0
        %1729 = vmatprep.subr.mxu0 0.0
        %1730 = vmatpush2.msra.mxu0 0.0
        %1731 = vmatprep.subr.mxu0 0.0
        %1732 = vmatpush2.msra.mxu0 0.0
        %1733 = vmatprep.subr.mxu0 0.0
        %1734 = vmatpush2.msra.mxu0 0.0
        %1735 = vmatprep.subr.mxu0 0.0
        %1736 = vmatpush2.msra.mxu0 0.0
        %1737 = vmatprep.subr.mxu0 0.0
        %1738 = vmatpush2.msra.mxu0 0.0
        %1739 = vmatprep.subr.mxu0 0.0
        %1740 = vmatpush2.msra.mxu0 0.0
        %1741 = vmatprep.subr.mxu0 0.0
        %1742 = vmatpush2.msra.mxu0 0.0
        %1743 = vmatprep.subr.mxu0 0.0
        %1744 = vmatpush2.msra.mxu0 0.0
        %1745 = vmatprep.subr.mxu0 0.0
        %1746 = vmatpush2.msra.mxu0 0.0
        %1747 = vmatprep.subr.mxu0 0.0
        %1748 = vmatpush2.msra.mxu0 0.0
        %1749 = vmatprep.mubr.f32.mxu0 0.0
        %1750 = vmatmul.mubr.f32.gmra.mxu0 %v1683
        %v1751 = vpop.f32.mrf.mxu0
        %v1752 = vadd.f32 0.0, %v1751
        %v1753 = vpop.f32.mrf.mxu0
        %1754 = vdwg.mxu0
        %v1756 = vsel %vm968, %v1603, 0
        %1758 = vmatprep.subr.mxu0 0.0
        %1759 = vmatpush1.msra.mxu0 0.0
        %1760 = vmatprep.subr.mxu0 0.0
        %1761 = vmatpush1.msra.mxu0 0.0
        %1762 = vmatprep.subr.mxu0 0.0
        %1763 = vmatpush1.msra.mxu0 0.0
        %1764 = vmatprep.subr.mxu0 0.0
        %1765 = vmatpush1.msra.mxu0 0.0
        %1766 = vmatprep.subr.mxu0 0.0
        %1767 = vmatpush1.msra.mxu0 0.0
        %1768 = vmatprep.subr.mxu0 0.0
        %1769 = vmatpush1.msra.mxu0 0.0
        %1770 = vmatprep.subr.mxu0 0.0
        %1771 = vmatpush1.msra.mxu0 0.0
        %1772 = vmatprep.subr.mxu0 0.0
        %1773 = vmatpush1.msra.mxu0 0.0
        %1774 = vmatprep.subr.mxu0 0.0
        %1775 = vmatpush1.msra.mxu0 0.0
        %1776 = vmatprep.subr.mxu0 0.0
        %1777 = vmatpush1.msra.mxu0 0.0
        %1778 = vmatprep.subr.mxu0 0.0
        %1779 = vmatpush1.msra.mxu0 0.0
        %1780 = vmatprep.subr.mxu0 0.0
        %1781 = vmatpush1.msra.mxu0 0.0
        %1782 = vmatprep.subr.mxu0 0.0
        %1783 = vmatpush1.msra.mxu0 0.0
        %1784 = vmatprep.subr.mxu0 0.0
        %1785 = vmatpush1.msra.mxu0 0.0
        %1786 = vmatprep.subr.mxu0 0.0
        %1787 = vmatpush1.msra.mxu0 0.0
        %1788 = vmatprep.subr.mxu0 0.0
        %1789 = vmatpush1.msra.mxu0 %v1607
        %1790 = vmatprep.subr.mxu0 0.0
        %1791 = vmatpush2.msra.mxu0 0.0
        %1792 = vmatprep.subr.mxu0 0.0
        %1793 = vmatpush2.msra.mxu0 0.0
        %1794 = vmatprep.subr.mxu0 0.0
        %1795 = vmatpush2.msra.mxu0 0.0
        %1796 = vmatprep.subr.mxu0 0.0
        %1797 = vmatpush2.msra.mxu0 0.0
        %1798 = vmatprep.subr.mxu0 0.0
        %1799 = vmatpush2.msra.mxu0 0.0
        %1800 = vmatprep.subr.mxu0 0.0
        %1801 = vmatpush2.msra.mxu0 0.0
        %1802 = vmatprep.subr.mxu0 0.0
        %1803 = vmatpush2.msra.mxu0 0.0
        %1804 = vmatprep.subr.mxu0 0.0
        %1805 = vmatpush2.msra.mxu0 0.0
        %1806 = vmatprep.subr.mxu0 0.0
        %1807 = vmatpush2.msra.mxu0 0.0
        %1808 = vmatprep.subr.mxu0 0.0
        %1809 = vmatpush2.msra.mxu0 0.0
        %1810 = vmatprep.subr.mxu0 0.0
        %1811 = vmatpush2.msra.mxu0 0.0
        %1812 = vmatprep.subr.mxu0 0.0
        %1813 = vmatpush2.msra.mxu0 0.0
        %1814 = vmatprep.subr.mxu0 0.0
        %1815 = vmatpush2.msra.mxu0 0.0
        %1816 = vmatprep.subr.mxu0 0.0
        %1817 = vmatpush2.msra.mxu0 0.0
        %1818 = vmatprep.subr.mxu0 0.0
        %1819 = vmatpush2.msra.mxu0 0.0
        %1820 = vmatprep.subr.mxu0 0.0
        %1821 = vmatpush2.msra.mxu0 0.0
        %1822 = vmatprep.mubr.f32.mxu0 0.0
        %1823 = vmatmul.mubr.f32.gmra.mxu0 %v1756
        %v1824 = vpop.f32.mrf.mxu0
        %v1825 = vadd.f32 0.0, %v1824
        %v1826 = vpop.f32.mrf.mxu0
        %1827 = vdwg.mxu0
        %v1829 = vsel %vm968, %v1604, 0
        %1831 = vmatprep.subr.mxu0 0.0
        %1832 = vmatpush1.msra.mxu0 0.0
        %1833 = vmatprep.subr.mxu0 0.0
        %1834 = vmatpush1.msra.mxu0 0.0
        %1835 = vmatprep.subr.mxu0 0.0
        %1836 = vmatpush1.msra.mxu0 0.0
        %1837 = vmatprep.subr.mxu0 0.0
        %1838 = vmatpush1.msra.mxu0 0.0
        %1839 = vmatprep.subr.mxu0 0.0
        %1840 = vmatpush1.msra.mxu0 0.0
        %1841 = vmatprep.subr.mxu0 0.0
        %1842 = vmatpush1.msra.mxu0 0.0
        %1843 = vmatprep.subr.mxu0 0.0
        %1844 = vmatpush1.msra.mxu0 0.0
        %1845 = vmatprep.subr.mxu0 0.0
        %1846 = vmatpush1.msra.mxu0 0.0
        %1847 = vmatprep.subr.mxu0 0.0
        %1848 = vmatpush1.msra.mxu0 0.0
        %1849 = vmatprep.subr.mxu0 0.0
        %1850 = vmatpush1.msra.mxu0 0.0
        %1851 = vmatprep.subr.mxu0 0.0
        %1852 = vmatpush1.msra.mxu0 0.0
        %1853 = vmatprep.subr.mxu0 0.0
        %1854 = vmatpush1.msra.mxu0 0.0
        %1855 = vmatprep.subr.mxu0 0.0
        %1856 = vmatpush1.msra.mxu0 0.0
        %1857 = vmatprep.subr.mxu0 0.0
        %1858 = vmatpush1.msra.mxu0 0.0
        %1859 = vmatprep.subr.mxu0 0.0
        %1860 = vmatpush1.msra.mxu0 0.0
        %1861 = vmatprep.subr.mxu0 0.0
        %1862 = vmatpush1.msra.mxu0 %v1608
        %1863 = vmatprep.subr.mxu0 0.0
        %1864 = vmatpush2.msra.mxu0 0.0
        %1865 = vmatprep.subr.mxu0 0.0
        %1866 = vmatpush2.msra.mxu0 0.0
        %1867 = vmatprep.subr.mxu0 0.0
        %1868 = vmatpush2.msra.mxu0 0.0
        %1869 = vmatprep.subr.mxu0 0.0
        %1870 = vmatpush2.msra.mxu0 0.0
        %1871 = vmatprep.subr.mxu0 0.0
        %1872 = vmatpush2.msra.mxu0 0.0
        %1873 = vmatprep.subr.mxu0 0.0
        %1874 = vmatpush2.msra.mxu0 0.0
        %1875 = vmatprep.subr.mxu0 0.0
        %1876 = vmatpush2.msra.mxu0 0.0
        %1877 = vmatprep.subr.mxu0 0.0
        %1878 = vmatpush2.msra.mxu0 0.0
        %1879 = vmatprep.subr.mxu0 0.0
        %1880 = vmatpush2.msra.mxu0 0.0
        %1881 = vmatprep.subr.mxu0 0.0
        %1882 = vmatpush2.msra.mxu0 0.0
        %1883 = vmatprep.subr.mxu0 0.0
        %1884 = vmatpush2.msra.mxu0 0.0
        %1885 = vmatprep.subr.mxu0 0.0
        %1886 = vmatpush2.msra.mxu0 0.0
        %1887 = vmatprep.subr.mxu0 0.0
        %1888 = vmatpush2.msra.mxu0 0.0
        %1889 = vmatprep.subr.mxu0 0.0
        %1890 = vmatpush2.msra.mxu0 0.0
        %1891 = vmatprep.subr.mxu0 0.0
        %1892 = vmatpush2.msra.mxu0 0.0
        %1893 = vmatprep.subr.mxu0 0.0
        %1894 = vmatpush2.msra.mxu0 0.0
        %1895 = vmatprep.mubr.f32.mxu0 0.0
        %1896 = vmatmul.mubr.f32.gmra.mxu0 %v1829
        %v1897 = vpop.f32.mrf.mxu0
        %v1898 = vadd.f32 0.0, %v1897
        %v1899 = vpop.f32.mrf.mxu0
        %1900 = vdwg.mxu0
        %v1901 = vsel %vm873, %v1679, 0.0
        %v1902 = vsel %vm873, %v1752, 0.0
        %v1903 = vadd.f32 %v1901, %v1902
        %v1904 = vsel %vm873, %v1825, 0.0
        %v1905 = vadd.f32 %v1903, %v1904
        %v1906 = vsel %vm873, %v1898, 0.0
        %v1907 = vadd.f32 %v1905, %v1906
        %v1908 = vld [vmem:[%s11] sm:$0x1]
        %v1910 = vlaneseq
        %v1911 = vshrl.u32 %v1910, 7
        %v1912 = vsub.s32 0, %v1911
        %v1913 = vrot.slane %v1908, %v1912
        %v1915 = vadd.f32 %v1907, %v1913
        %v1916 = vadd.f32 %v657, %v1915
        %v1917 = vsel %vm873, %v1916, 0.0
        %1918 = vadd.xlane.f32.xlu0 %v1917
        %v1919 = vpop.xlane.xlu0 %1918
        %v1920 = vrcp.pop 32.0
        %v1921 = vmul.f32 %v1919, %v1920
        %v1922 = vsub.f32 %v1916, %v1921
        %v1923 = vmul.f32 %v1922, %v1922
        %v1924 = vsel %vm873, %v1923, 0.0
        %1925 = vadd.xlane.f32.xlu0 %v1924
        %v1926 = vpop.xlane.xlu0 %1925
        %v1927 = vmul.f32 %v1926, %v1920
        %v1928 = vadd.f32 %v1927, 1e-05
        %v1929 = vrsqrt.pop %v1928
        %v1930 = vmul.f32 %v1922, %v1929
        %v1931 = vld [vmem:[%s12] sm:$0x1]
        %v1933 = vlaneseq
        %v1934 = vshrl.u32 %v1933, 7
        %v1935 = vsub.s32 0, %v1934
        %v1936 = vrot.slane %v1931, %v1935
        %v1938 = vmul.f32 %v1930, %v1936
        %v1939 = vld [vmem:[%s13] sm:$0x1]
        %v1941 = vlaneseq
        %v1942 = vshrl.u32 %v1941, 7
        %v1943 = vsub.s32 0, %v1942
        %v1944 = vrot.slane %v1939, %v1943
        %v1946 = vadd.f32 %v1938, %v1944
        %1947 = vst.msk [vmem:[%s649] sm:$0xff] %vm873, %v1946
        %s1948 = sand.u32 %s376, 1
        %s1949 = scalar_lea.sflag [#allocation6], %s1948
        %s1950 = sand.u32 %s376, 1
        %s1951 = smul.addr %s1950, 8
        %s1952 = scalar_lea.vmem [#allocation16], %s1951
        // Predicated region
        $region109: #{tpu_custom_call.1} parent=75 // pred_check
          %p1953 = pneg %p386
        $region110: #{tpu_custom_call.1} parent=75 // pred_check_branch
          %1955 = sbr.rel (%p1953) target = $region112
        $region111: #{tpu_custom_call.1} parent=75 // pred_region
          %s1957 = ssub.s32 128, 128
          %1958 = vsyncadd %s1949, %s1957
          %s1959 = sadd.s32 %s41, %s40
          %s1960 = smul.addr %s1959, 128
          %s1961 = scalar_lea.hbm %s14, %s1960
          %s1963 = sshll.u32 %s1952, 4
          %s1964 = int_to_ptr.vmem [resolvable:$true] %s1963
          %1966 = dma.vmem_to_hbm [thread:$0]  %s1964, 128, %s1961, %s1949
        $region112: #{tpu_custom_call.1} parent=75 // pred_fallthru
          _
      $region76: #{tpu_custom_call.1} parent=5 // pred_fallthru
        _
      %p1967 = scmp.le.s32.totalorder 2, %s31
      // Predicated region
      $region113: #{tpu_custom_call.1} parent=5 // pred_check
        %p1968 = pneg %p1967
      $region114: #{tpu_custom_call.1} parent=5 // pred_check_branch
        %1970 = sbr.rel (%p1968) target = $region116
      $region115: #{tpu_custom_call.1} parent=5 // pred_region
        %s1971 = ssub.s32 %s31, 2
        // Predicated region
        $region117: #{tpu_custom_call.1} parent=115 // pred_check
          %p1972 = pneg %p392
        $region118: #{tpu_custom_call.1} parent=115 // pred_check_branch
          %1974 = sbr.rel (%p1972) target = $region120
        $region119: #{tpu_custom_call.1} parent=115 // pred_region
          %s1975 = sand.u32 %s377, 1
          %s1976 = scalar_lea.sflag [#allocation6], %s1975
          %s1977 = sand.u32 %s377, 1
          %s1978 = smul.addr %s1977, 8
          %s1979 = scalar_lea.vmem [#allocation16], %s1978
          %1980 = dma.done %s1976, 128
        $region120: #{tpu_custom_call.1} parent=115 // pred_fallthru
          _
      $region116: #{tpu_custom_call.1} parent=5 // pred_fallthru
        _
    $region6: #{tpu_custom_call.1} parent=1 // loop_footer
      %s35 = sadd.s32 1, %s31
    $region7: #{tpu_custom_call.1} parent=1 // loop_footer_branch
      %30 = sbr.rel target = $region3
    $region8: #{tpu_custom_call.1} parent=1 // loop_exit
      _
    %1981 = vsyncpa [#allocation5], 1
    %s1982 = scalar_lea.sflag [#allocation5], 1
    %1983 = vsyncpa %s1982, 1
    %1984 = vsyncpa [#allocation8], 1
    %s1985 = scalar_lea.sflag [#allocation8], 1
    %1986 = vsyncpa %s1985, 1
    %1987 = vsyncpa [#allocation11], 1
    %1988 = vsyncpa [#allocation14], 1
    %1989 = vsyncpa [#allocation6], 1
    %s1990 = scalar_lea.sflag [#allocation6], 1
    %1991 = vsyncpa %s1990, 1

</llo_original>
